<compile_context>
chip_gen: v7x
topology: tpu7x:2x2x1
jax: 0.10.0
libtpu: 0.0.40
codegen_flags: <defaults>
</compile_context>

<pallas_src>
import functools
import math

import jax
import jax.numpy as jnp
from jax.experimental import pallas as pl
from jax.experimental.pallas import tpu as pltpu

LOG_STD_MAX = 2.0
LOG_STD_MIN = -20.0
_LOG2 = math.log(2.0)
_HALF_LOG_2PI = 0.5 * math.log(2.0 * math.pi)


def _round_up(x, m):
    return (x + m - 1) // m * m


def _pad2(a, rows, cols):
    return jnp.pad(a, ((0, rows - a.shape[0]), (0, cols - a.shape[1])))


def _device_kind():
    try:
        return jax.devices()[0].device_kind.lower()
    except Exception:
        return ""


def _is_v7x():
    kind = _device_kind()
    return ("v7" in kind) or ("7x" in kind)


def _vmem_budget_bytes():
    """VMEM budget (with headroom) for this generation; conservative fallback."""
    cap = None
    try:
        cap = getattr(pltpu.get_tpu_info(), "vmem_capacity_bytes", None)
    except Exception:
        cap = None
    if not cap:
        kind = _device_kind()
        if ("v5" in kind) or ("v6" in kind):
            cap = 128 * 1024 * 1024          # v5e / v6e physical VMEM
        else:
            cap = 64 * 1024 * 1024           # v7x (or unknown): be conservative
    return int(cap) * 3 // 4                  # leave headroom for compiler scratch


def actor_kernel(obs_ref, w1_ref, b1_ref, w2_ref, b2_ref, wh_ref, bh_ref, aux_ref,
                 out_ref, *, k, act_dim, act_limit, deterministic):
    f32 = jnp.float32
    ka = k * act_dim
    out_w = out_ref.shape[-1]

    # ---- MLP trunk: Linear -> ReLU -> Linear -> ReLU (bf16 MXU, f32 acc) ----
    x = obs_ref[...].astype(jnp.bfloat16)
    h = jnp.dot(x, w1_ref[...], preferred_element_type=f32) + b1_ref[...]
    h = jnp.maximum(h, 0.0).astype(jnp.bfloat16)
    h = jnp.dot(h, w2_ref[...], preferred_element_type=f32) + b2_ref[...]
    h = jnp.maximum(h, 0.0)                          # stays f32: head runs in f32

    # ---- fused mu / log_std head in f32 (log_std error is exponentiated) ----
    head = jnp.dot(h, wh_ref[...], preferred_element_type=f32) + bh_ref[...]
    mu = head[:, :ka]                                # (TN, k*act_dim)
    log_std = jnp.clip(head[:, ka:2 * ka], LOG_STD_MIN, LOG_STD_MAX)
    inv_std = jnp.exp(-log_std)                      # EUP; shared by all components

    # ---- merged per-row aux block: eps in lanes [0:act_dim], comp in lane act_dim ----
    eps = aux_ref[:, :act_dim]
    comp = aux_ref[:, act_dim:act_dim + 1]           # component id, float-coded, exact

    # ---- in-kernel constants (iota + compares only; no vector int div/mod) ----
    lane = jax.lax.broadcasted_iota(jnp.int32, (1, ka), 1).astype(f32)
    base = comp * float(act_dim)                     # (TN, 1)
    sel = jnp.logical_and(lane >= base, lane < base + float(act_dim))   # (TN, ka)

    # tile_mat[l, a] = 1 if l % act_dim == a   (OR over the k static group offsets)
    tr = jax.lax.broadcasted_iota(jnp.int32, (ka, act_dim), 0)
    tc = jax.lax.broadcasted_iota(jnp.int32, (ka, act_dim), 1)
    tm = tr == tc
    for g in range(1, k):
        tm = jnp.logical_or(tm, tr == tc + g * act_dim)
    tile_mat = tm.astype(f32)                        # (ka, act_dim)

    # spread_mat[a, l] = 1 if l % act_dim == a  (tile_mat transposed, built directly)
    sr = jax.lax.broadcasted_iota(jnp.int32, (act_dim, ka), 0)
    sc = jax.lax.broadcasted_iota(jnp.int32, (act_dim, ka), 1)
    sm = sc == sr
    for g in range(1, k):
        sm = jnp.logical_or(sm, sc == sr + g * act_dim)
    spread_mat = sm.astype(f32)                      # (act_dim, ka)

    # gmat[l, g] = 1 if l // act_dim == g
    gr = jax.lax.broadcasted_iota(jnp.int32, (ka, k), 0)
    gc = jax.lax.broadcasted_iota(jnp.int32, (ka, k), 1)
    gmat = jnp.logical_and(gr >= gc * act_dim, gr < (gc + 1) * act_dim).astype(f32)

    # output packing matrices: act -> lanes [0:act_dim], logp -> lane act_dim
    orow = jax.lax.broadcasted_iota(jnp.int32, (act_dim, out_w), 0)
    ocol = jax.lax.broadcasted_iota(jnp.int32, (act_dim, out_w), 1)
    oscat = (orow == ocol).astype(f32)               # (act_dim, out_w)
    lscat = (jax.lax.broadcasted_iota(jnp.int32, (1, out_w), 1) == act_dim).astype(f32)

    # ---- gather the sampled mixture component (mask + two tiny matmuls) ----
    mu_sel = jnp.dot(jnp.where(sel, mu, 0.0), tile_mat, preferred_element_type=f32)
    ls_sel = jnp.dot(jnp.where(sel, log_std, 0.0), tile_mat, preferred_element_type=f32)

    if deterministic:
        pi = mu_sel
    else:
        pi = mu_sel + jnp.exp(ls_sel) * eps          # Normal(mu, std).rsample()

    # ---- tanh-squash correction (identical for every mixture member) ----
    y = -2.0 * pi
    softplus = jnp.maximum(y, 0.0) + jnp.log1p(jnp.exp(-jnp.abs(y)))
    corr = jnp.sum(2.0 * (_LOG2 - pi - softplus), axis=1, keepdims=True)   # (TN, 1)

    # ---- batched per-component gaussian log-prob + logsumexp over k ----
    pi_t = jnp.dot(pi, spread_mat, preferred_element_type=f32)   # (TN, ka): pi tiled per group
    z = (pi_t - mu) * inv_std
    elem = -0.5 * z * z - log_std                                # (TN, ka)
    lp = jnp.dot(elem, gmat, preferred_element_type=f32) - act_dim * _HALF_LOG_2PI
    m = jnp.max(lp, axis=1, keepdims=True)
    s = jnp.sum(jnp.exp(lp - m), axis=1, keepdims=True)
    logp = m + jnp.log(s) - corr - math.log(float(k))            # (TN, 1)

    # ---- packed output: act in lanes [0:act_dim], logp in lane act_dim ----
    act = act_limit * jnp.tanh(pi)                               # (TN, act_dim)
    out_ref[...] = jnp.dot(act, oscat, preferred_element_type=f32) + logp * lscat


def squashed_gmm_actor(obs, params, comp, eps, *, k, act_dim, act_limit,
                       deterministic=False, tile_n=1024, single_buffer_residents=True):
    """params: dict of (W, b) stored as [in, out] / [1, out] float32 arrays."""
    n, obs_dim = obs.shape
    f32 = jnp.float32

    h1 = params["w1"].shape[1]
    h2 = params["w2"].shape[1]
    ka = k * act_dim
    h1p = _round_up(h1, 128)
    h2p = _round_up(h2, 128)
    head_p = _round_up(2 * ka, 128)
    aux_w = _round_up(act_dim + 1, 8)
    # v5e/v6e: compact output block (cut the f32 writeback); v7x: keep 128-lane dense.
    out_w = 128 if _is_v7x() else _round_up(act_dim + 1, 8)

    # Zero-padded (lane-multiple) weights; trunk bf16, head f32, f32 biases.
    w1 = _pad2(params["w1"], obs_dim, h1p).astype(jnp.bfloat16)
    b1 = _pad2(params["b1"], 1, h1p).astype(f32)
    w2 = _pad2(params["w2"], h1p, h2p).astype(jnp.bfloat16)
    b2 = _pad2(params["b2"], 1, h2p).astype(f32)
    wh = _pad2(jnp.concatenate([params["wmu"], params["wls"]], axis=1),
               h2p, head_p).astype(f32)
    bh = _pad2(jnp.concatenate([params["bmu"], params["bls"]], axis=1),
               1, head_p).astype(f32)

    # Merged per-row aux block: eps in lanes [0:act_dim], comp (as f32) in lane act_dim.
    aux = jnp.concatenate([eps.astype(f32), comp.astype(f32)], axis=1)
    aux = jnp.pad(aux, ((0, 0), (0, aux_w - (act_dim + 1))))

    # ---- batch tile: fit the VMEM budget AND give the pipeline >= 4 steps ----
    budget = _vmem_budget_bytes()
    resident_bytes = 2 * (2 * (obs_dim * h1p + h1p * h2p) + 4 * h2p * head_p
                          + 4 * (h1p + h2p + head_p))            # worst-case double-buffered
    row_bytes = (8 * (obs_dim + aux_w + out_w)                   # pipelined io blocks (x2 bufs)
                 + 6 * h1p + 6 * h2p + 4 * head_p                # trunk / head intermediates
                 + 4 * (8 * ka + 6 * act_dim + 2 * k))           # elementwise working set
    tn_vmem = max(8, (max(budget - resident_bytes, 8 * row_bytes) // row_bytes) // 8 * 8)
    tn_steps = max(8, _round_up(-(-n // 4), 8))                  # aim for >= 4 grid steps
    tn = max(8, min(_round_up(int(tile_n), 8), tn_steps, tn_vmem))

    n_pad = _round_up(n, tn)
    if n_pad != n:
        obs = jnp.pad(obs, ((0, n_pad - n), (0, 0)))
        aux = jnp.pad(aux, ((0, n_pad - n), (0, 0)))
    grid = (n_pad // tn,)

    def batched(cols):
        return pl.BlockSpec((tn, cols), lambda i: (i, 0))

    def build(single_buffer):
        if single_buffer:
            def resident(shape):
                # Constant block index -> fetched once; don't double-buffer it.
                return pl.BlockSpec(shape, lambda i: (0, 0),
                                    pipeline_mode=pl.Buffered(buffer_count=1))
        else:
            def resident(shape):
                return pl.BlockSpec(shape, lambda i: (0, 0))

        in_specs = [
            batched(obs_dim),             # obs
            resident((obs_dim, h1p)),     # w1
            resident((1, h1p)),           # b1
            resident((h1p, h2p)),         # w2
            resident((1, h2p)),           # b2
            resident((h2p, head_p)),      # fused head weight (f32)
            resident((1, head_p)),        # fused head bias
            batched(aux_w),               # merged eps + comp
        ]
        out_specs = pl.BlockSpec((tn, out_w), lambda i: (i, 0))

        flops = 2 * n_pad * (obs_dim * h1p + h1p * h2p + h2p * head_p
                             + 3 * ka * act_dim + ka * k + act_dim * out_w)
        transcendentals = n_pad * (ka + 5 * act_dim + k + 2)
        bytes_accessed = (4 * n_pad * (obs_dim + aux_w + out_w)
                          + 2 * (obs_dim * h1p + h1p * h2p) + 4 * h2p * head_p
                          + 4 * (h1p + h2p + head_p))

        kernel = functools.partial(actor_kernel, k=k, act_dim=act_dim,
                                   act_limit=float(act_limit),
                                   deterministic=deterministic)
        return pl.pallas_call(
            kernel,
            out_shape=jax.ShapeDtypeStruct((n_pad, out_w), f32),
            grid=grid,
            in_specs=in_specs,
            out_specs=out_specs,
            compiler_params=pltpu.CompilerParams(
                dimension_semantics=("parallel",),
                vmem_limit_bytes=int(budget)),
            cost_estimate=pl.CostEstimate(flops=int(flops),
                                          transcendentals=int(transcendentals),
                                          bytes_accessed=int(bytes_accessed)),
        )

    args = (obs, w1, b1, w2, b2, wh, bh, aux)
    use_single = bool(single_buffer_residents) and hasattr(pl, "Buffered")
    if use_single:
        try:
            out = build(True)(*args)
        except Exception:
            # This JAX build rejects pipeline_mode on pallas_call BlockSpecs;
            # fall back to default double-buffering (correctness unaffected).
            out = build(False)(*args)
    else:
        out = build(False)(*args)

    return out[:n, :act_dim], out[:n, act_dim]


def reference_actor(obs, params, comp, eps, *, k, act_dim, act_limit,
                    deterministic=False):
    """Pure-JAX f32 reference matching the PyTorch module."""
    h = jax.nn.relu(obs @ params["w1"] + params["b1"])
    h = jax.nn.relu(h @ params["w2"] + params["b2"])
    mu = h @ params["wmu"] + params["bmu"]
    log_std = jnp.clip(h @ params["wls"] + params["bls"], LOG_STD_MIN, LOG_STD_MAX)
    std = jnp.exp(log_std)
    n = obs.shape[0]
    mu_k = mu.reshape(n, k, act_dim)
    std_k = std.reshape(n, k, act_dim)
    ls_k = log_std.reshape(n, k, act_dim)
    rows = jnp.arange(n)
    c = comp[:, 0]
    mu_sel = mu_k[rows, c]
    std_sel = std_k[rows, c]
    pi = mu_sel if deterministic else mu_sel + std_sel * eps
    corr = jnp.sum(2.0 * (_LOG2 - pi - jax.nn.softplus(-2.0 * pi)), axis=1)
    z = (pi[:, None, :] - mu_k) / std_k
    lp = jnp.sum(-0.5 * z * z - ls_k - _HALF_LOG_2PI, axis=2)          # (n, k)
    m = jnp.max(lp, axis=1)
    logp = (m + jnp.log(jnp.sum(jnp.exp(lp - m[:, None]), axis=1))
            - corr - math.log(float(k)))
    return act_limit * jnp.tanh(pi), logp


if __name__ == "__main__":
    N, OBS_DIM, H1, H2, ACT_DIM, K = 8, 16, 32, 32, 4, 4
    ACT_LIMIT = 1.0

    key = jax.random.PRNGKey(0)
    keys = jax.random.split(key, 12)

    def init_linear(kw, kb, fan_in, fan_out):
        w = 0.1 * jax.random.normal(kw, (fan_in, fan_out), jnp.float32)
        b = 0.1 * jax.random.normal(kb, (1, fan_out), jnp.float32)
        return w, b

    w1, b1 = init_linear(keys[0], keys[1], OBS_DIM, H1)
    w2, b2 = init_linear(keys[2], keys[3], H1, H2)
    wmu, bmu = init_linear(keys[4], keys[5], H2, K * ACT_DIM)
    wls, bls = init_linear(keys[6], keys[7], H2, K * ACT_DIM)
    params = dict(w1=w1, b1=b1, w2=w2, b2=b2, wmu=wmu, bmu=bmu, wls=wls, bls=bls)

    obs = jax.random.normal(keys[8], (N, OBS_DIM), jnp.float32)
    # np.random.randint(0, k, n) equivalent, made deterministic:
    comp = jax.random.randint(keys[9], (N, 1), 0, K, jnp.int32)
    # Normal(mu, std).rsample() noise, made deterministic:
    eps = jax.random.normal(keys[10], (N, ACT_DIM), jnp.float32)

    pi_action, logp_pi = squashed_gmm_actor(
        obs, params, comp, eps, k=K, act_dim=ACT_DIM, act_limit=ACT_LIMIT,
        deterministic=False)
    jax.block_until_ready((pi_action, logp_pi))

    pi_ref, logp_ref = reference_actor(
        obs, params, comp, eps, k=K, act_dim=ACT_DIM, act_limit=ACT_LIMIT,
        deterministic=False)

    assert pi_action.shape == (N, ACT_DIM)
    assert logp_pi.shape == (N,)
    assert bool(jnp.all(jnp.isfinite(pi_action))) and bool(jnp.all(jnp.isfinite(logp_pi)))
    # trunk matmuls run with bf16 operands (f32 accumulate); head is f32
    assert bool(jnp.allclose(pi_action, pi_ref, atol=5e-2, rtol=0.0))
    assert bool(jnp.allclose(logp_pi, logp_ref, atol=2e-1, rtol=0.0))
    print("KERNEL_OK")
</pallas_src>

<mosaic_0001>
module attributes {stable_mosaic.version = 11 : i64} {
  func.func @actor_kernel(%arg0: i32, %arg1: memref<8x16xf32, #tpu.memory_space<vmem>>, %arg2: memref<16x128xbf16, #tpu.memory_space<vmem>>, %arg3: memref<1x128xf32, #tpu.memory_space<vmem>>, %arg4: memref<128x128xbf16, #tpu.memory_space<vmem>>, %arg5: memref<1x128xf32, #tpu.memory_space<vmem>>, %arg6: memref<128x128xf32, #tpu.memory_space<vmem>>, %arg7: memref<1x128xf32, #tpu.memory_space<vmem>>, %arg8: memref<8x8xf32, #tpu.memory_space<vmem>>, %arg9: memref<8x8xf32, #tpu.memory_space<vmem>>) attributes {dimension_semantics = [#tpu.dimension_semantics<parallel>], iteration_bounds = array<i64: 1>, scalar_prefetch = 0 : i64, scratch_operands = 0 : i64, tpu.core_type = #tpu.core_type<tc>, window_params = [{transform_indices = @transform_0, window_bounds = array<i64: 8, 16>}, {pipeline_mode = #tpu.pipeline_mode<synchronous>, transform_indices = @transform_1, window_bounds = array<i64: 16, 128>}, {pipeline_mode = #tpu.pipeline_mode<synchronous>, transform_indices = @transform_2, window_bounds = array<i64: 1, 128>}, {pipeline_mode = #tpu.pipeline_mode<synchronous>, transform_indices = @transform_3, window_bounds = array<i64: 128, 128>}, {pipeline_mode = #tpu.pipeline_mode<synchronous>, transform_indices = @transform_4, window_bounds = array<i64: 1, 128>}, {pipeline_mode = #tpu.pipeline_mode<synchronous>, transform_indices = @transform_5, window_bounds = array<i64: 128, 128>}, {pipeline_mode = #tpu.pipeline_mode<synchronous>, transform_indices = @transform_6, window_bounds = array<i64: 1, 128>}, {transform_indices = @transform_7, window_bounds = array<i64: 8, 8>}, {transform_indices = @transform_8, window_bounds = array<i64: 8, 8>}]} {
    %c0 = arith.constant 0 : index
    %c0_0 = arith.constant 0 : index
    %0 = vector.load %arg1[%c0, %c0_0] : memref<8x16xf32, #tpu.memory_space<vmem>>, vector<8x16xf32>
    %1 = arith.truncf %0 : vector<8x16xf32> to vector<8x16xbf16>
    %c0_1 = arith.constant 0 : index
    %c0_2 = arith.constant 0 : index
    %2 = vector.load %arg2[%c0_1, %c0_2] : memref<16x128xbf16, #tpu.memory_space<vmem>>, vector<16x128xbf16>
    %cst = arith.constant dense<0.000000e+00> : vector<8x128xf32>
    %3 = tpu.matmul %1, %2, %cst {dimension_numbers = #tpu.dot_dimension_numbers<[1], [0], [0], [1], [0, 0, 1, 1], [], []>} : vector<8x16xbf16>, vector<16x128xbf16>, vector<8x128xf32> -> vector<8x128xf32>
    %c0_3 = arith.constant 0 : index
    %c0_4 = arith.constant 0 : index
    %4 = vector.load %arg3[%c0_3, %c0_4] : memref<1x128xf32, #tpu.memory_space<vmem>>, vector<1x128xf32>
    %5 = vector.broadcast %4 : vector<1x128xf32> to vector<8x128xf32>
    %6 = arith.addf %3, %5 : vector<8x128xf32>
    %cst_5 = arith.constant 0.000000e+00 : f32
    %7 = vector.broadcast %cst_5 : f32 to vector<8x128xf32>
    %8 = arith.maximumf %6, %7 : vector<8x128xf32>
    %9 = arith.truncf %8 : vector<8x128xf32> to vector<8x128xbf16>
    %c0_6 = arith.constant 0 : index
    %c0_7 = arith.constant 0 : index
    %10 = vector.load %arg4[%c0_6, %c0_7] : memref<128x128xbf16, #tpu.memory_space<vmem>>, vector<128x128xbf16>
    %cst_8 = arith.constant dense<0.000000e+00> : vector<8x128xf32>
    %11 = tpu.matmul %9, %10, %cst_8 {dimension_numbers = #tpu.dot_dimension_numbers<[1], [0], [0], [1], [0, 0, 1, 1], [], []>} : vector<8x128xbf16>, vector<128x128xbf16>, vector<8x128xf32> -> vector<8x128xf32>
    %c0_9 = arith.constant 0 : index
    %c0_10 = arith.constant 0 : index
    %12 = vector.load %arg5[%c0_9, %c0_10] : memref<1x128xf32, #tpu.memory_space<vmem>>, vector<1x128xf32>
    %13 = vector.broadcast %12 : vector<1x128xf32> to vector<8x128xf32>
    %14 = arith.addf %11, %13 : vector<8x128xf32>
    %cst_11 = arith.constant 0.000000e+00 : f32
    %15 = vector.broadcast %cst_11 : f32 to vector<8x128xf32>
    %16 = arith.maximumf %14, %15 : vector<8x128xf32>
    %c0_12 = arith.constant 0 : index
    %c0_13 = arith.constant 0 : index
    %17 = vector.load %arg6[%c0_12, %c0_13] : memref<128x128xf32, #tpu.memory_space<vmem>>, vector<128x128xf32>
    %cst_14 = arith.constant dense<0.000000e+00> : vector<8x128xf32>
    %18 = tpu.matmul %16, %17, %cst_14 {dimension_numbers = #tpu.dot_dimension_numbers<[1], [0], [0], [1], [0, 0, 1, 1], [], []>} : vector<8x128xf32>, vector<128x128xf32>, vector<8x128xf32> -> vector<8x128xf32>
    %c0_15 = arith.constant 0 : index
    %c0_16 = arith.constant 0 : index
    %19 = vector.load %arg7[%c0_15, %c0_16] : memref<1x128xf32, #tpu.memory_space<vmem>>, vector<1x128xf32>
    %20 = vector.broadcast %19 : vector<1x128xf32> to vector<8x128xf32>
    %21 = arith.addf %18, %20 : vector<8x128xf32>
    %22 = vector.extract_strided_slice %21 {offsets = [0, 0], sizes = [8, 16], strides = [1, 1]} : vector<8x128xf32> to vector<8x16xf32>
    %23 = vector.extract_strided_slice %21 {offsets = [0, 16], sizes = [8, 16], strides = [1, 1]} : vector<8x128xf32> to vector<8x16xf32>
    %cst_17 = arith.constant -2.000000e+01 : f32
    %cst_18 = arith.constant 2.000000e+00 : f32
    %24 = vector.broadcast %cst_17 : f32 to vector<8x16xf32>
    %25 = arith.maximumf %24, %23 : vector<8x16xf32>
    %26 = vector.broadcast %cst_18 : f32 to vector<8x16xf32>
    %27 = arith.minimumf %26, %25 : vector<8x16xf32>
    %cst_19 = arith.constant 0.000000e+00 : f32
    %28 = vector.broadcast %cst_19 : f32 to vector<8x16xf32>
    %29 = arith.subf %28, %27 : vector<8x16xf32>
    %30 = math.exp %29 : vector<8x16xf32>
    %c0_20 = arith.constant 0 : index
    %c0_21 = arith.constant 0 : index
    %31 = vector.load %arg8[%c0_20, %c0_21] : memref<8x8xf32, #tpu.memory_space<vmem>>, vector<8x4xf32>
    %c0_22 = arith.constant 0 : index
    %c4 = arith.constant 4 : index
    %32 = vector.load %arg8[%c0_22, %c4] : memref<8x8xf32, #tpu.memory_space<vmem>>, vector<8x1xf32>
    %33 = tpu.iota {dimensions = array<i32: 1>} : vector<1x16xi32>
    %34 = arith.sitofp %33 : vector<1x16xi32> to vector<1x16xf32>
    %cst_23 = arith.constant 4.000000e+00 : f32
    %35 = vector.broadcast %cst_23 : f32 to vector<8x1xf32>
    %36 = arith.mulf %32, %35 : vector<8x1xf32>
    %37 = vector.broadcast %34 : vector<1x16xf32> to vector<8x16xf32>
    %38 = vector.broadcast %36 : vector<8x1xf32> to vector<8x16xf32>
    %39 = arith.cmpf oge, %37, %38 : vector<8x16xf32>
    %cst_24 = arith.constant 4.000000e+00 : f32
    %40 = vector.broadcast %cst_24 : f32 to vector<8x1xf32>
    %41 = arith.addf %36, %40 : vector<8x1xf32>
    %42 = vector.broadcast %34 : vector<1x16xf32> to vector<8x16xf32>
    %43 = vector.broadcast %41 : vector<8x1xf32> to vector<8x16xf32>
    %44 = arith.cmpf olt, %42, %43 : vector<8x16xf32>
    %45 = arith.andi %39, %44 : vector<8x16xi1>
    %46 = tpu.iota {dimensions = array<i32: 0>} : vector<16x4xi32>
    %47 = tpu.iota {dimensions = array<i32: 1>} : vector<16x4xi32>
    %48 = arith.cmpi eq, %46, %47 : vector<16x4xi32>
    %c4_i32 = arith.constant 4 : i32
    %49 = vector.broadcast %c4_i32 : i32 to vector<16x4xi32>
    %50 = arith.addi %47, %49 : vector<16x4xi32>
    %51 = arith.cmpi eq, %46, %50 : vector<16x4xi32>
    %52 = arith.ori %48, %51 : vector<16x4xi1>
    %c8_i32 = arith.constant 8 : i32
    %53 = vector.broadcast %c8_i32 : i32 to vector<16x4xi32>
    %54 = arith.addi %47, %53 : vector<16x4xi32>
    %55 = arith.cmpi eq, %46, %54 : vector<16x4xi32>
    %56 = arith.ori %52, %55 : vector<16x4xi1>
    %c12_i32 = arith.constant 12 : i32
    %57 = vector.broadcast %c12_i32 : i32 to vector<16x4xi32>
    %58 = arith.addi %47, %57 : vector<16x4xi32>
    %59 = arith.cmpi eq, %46, %58 : vector<16x4xi32>
    %60 = arith.ori %56, %59 : vector<16x4xi1>
    %61 = arith.extui %60 : vector<16x4xi1> to vector<16x4xi32>
    %62 = arith.sitofp %61 : vector<16x4xi32> to vector<16x4xf32>
    %63 = tpu.iota {dimensions = array<i32: 0>} : vector<4x16xi32>
    %64 = tpu.iota {dimensions = array<i32: 1>} : vector<4x16xi32>
    %65 = arith.cmpi eq, %64, %63 : vector<4x16xi32>
    %c4_i32_25 = arith.constant 4 : i32
    %66 = vector.broadcast %c4_i32_25 : i32 to vector<4x16xi32>
    %67 = arith.addi %63, %66 : vector<4x16xi32>
    %68 = arith.cmpi eq, %64, %67 : vector<4x16xi32>
    %69 = arith.ori %65, %68 : vector<4x16xi1>
    %c8_i32_26 = arith.constant 8 : i32
    %70 = vector.broadcast %c8_i32_26 : i32 to vector<4x16xi32>
    %71 = arith.addi %63, %70 : vector<4x16xi32>
    %72 = arith.cmpi eq, %64, %71 : vector<4x16xi32>
    %73 = arith.ori %69, %72 : vector<4x16xi1>
    %c12_i32_27 = arith.constant 12 : i32
    %74 = vector.broadcast %c12_i32_27 : i32 to vector<4x16xi32>
    %75 = arith.addi %63, %74 : vector<4x16xi32>
    %76 = arith.cmpi eq, %64, %75 : vector<4x16xi32>
    %77 = arith.ori %73, %76 : vector<4x16xi1>
    %78 = arith.extui %77 : vector<4x16xi1> to vector<4x16xi32>
    %79 = arith.sitofp %78 : vector<4x16xi32> to vector<4x16xf32>
    %80 = tpu.iota {dimensions = array<i32: 0>} : vector<16x4xi32>
    %81 = tpu.iota {dimensions = array<i32: 1>} : vector<16x4xi32>
    %c4_i32_28 = arith.constant 4 : i32
    %82 = vector.broadcast %c4_i32_28 : i32 to vector<16x4xi32>
    %83 = arith.muli %81, %82 : vector<16x4xi32>
    %84 = arith.cmpi sge, %80, %83 : vector<16x4xi32>
    %c1_i32 = arith.constant 1 : i32
    %85 = vector.broadcast %c1_i32 : i32 to vector<16x4xi32>
    %86 = arith.addi %81, %85 : vector<16x4xi32>
    %c4_i32_29 = arith.constant 4 : i32
    %87 = vector.broadcast %c4_i32_29 : i32 to vector<16x4xi32>
    %88 = arith.muli %86, %87 : vector<16x4xi32>
    %89 = arith.cmpi slt, %80, %88 : vector<16x4xi32>
    %90 = arith.andi %84, %89 : vector<16x4xi1>
    %91 = arith.extui %90 : vector<16x4xi1> to vector<16x4xi32>
    %92 = arith.sitofp %91 : vector<16x4xi32> to vector<16x4xf32>
    %93 = tpu.iota {dimensions = array<i32: 0>} : vector<4x8xi32>
    %94 = tpu.iota {dimensions = array<i32: 1>} : vector<4x8xi32>
    %95 = arith.cmpi eq, %93, %94 : vector<4x8xi32>
    %96 = arith.extui %95 : vector<4x8xi1> to vector<4x8xi32>
    %97 = arith.sitofp %96 : vector<4x8xi32> to vector<4x8xf32>
    %98 = tpu.iota {dimensions = array<i32: 1>} : vector<1x8xi32>
    %c4_i32_30 = arith.constant 4 : i32
    %99 = vector.broadcast %c4_i32_30 : i32 to vector<1x8xi32>
    %100 = arith.cmpi eq, %98, %99 : vector<1x8xi32>
    %101 = arith.extui %100 : vector<1x8xi1> to vector<1x8xi32>
    %102 = arith.sitofp %101 : vector<1x8xi32> to vector<1x8xf32>
    %cst_31 = arith.constant 0.000000e+00 : f32
    %103 = vector.broadcast %cst_31 : f32 to vector<8x16xf32>
    %104 = arith.select %45, %22, %103 : vector<8x16xi1>, vector<8x16xf32>
    %cst_32 = arith.constant dense<0.000000e+00> : vector<8x4xf32>
    %105 = tpu.matmul %104, %62, %cst_32 {dimension_numbers = #tpu.dot_dimension_numbers<[1], [0], [0], [1], [0, 0, 1, 1], [], []>} : vector<8x16xf32>, vector<16x4xf32>, vector<8x4xf32> -> vector<8x4xf32>
    %cst_33 = arith.constant 0.000000e+00 : f32
    %106 = vector.broadcast %cst_33 : f32 to vector<8x16xf32>
    %107 = arith.select %45, %27, %106 : vector<8x16xi1>, vector<8x16xf32>
    %cst_34 = arith.constant dense<0.000000e+00> : vector<8x4xf32>
    %108 = tpu.matmul %107, %62, %cst_34 {dimension_numbers = #tpu.dot_dimension_numbers<[1], [0], [0], [1], [0, 0, 1, 1], [], []>} : vector<8x16xf32>, vector<16x4xf32>, vector<8x4xf32> -> vector<8x4xf32>
    %109 = math.exp %108 : vector<8x4xf32>
    %110 = arith.mulf %109, %31 : vector<8x4xf32>
    %111 = arith.addf %105, %110 : vector<8x4xf32>
    %cst_35 = arith.constant -2.000000e+00 : f32
    %112 = vector.broadcast %cst_35 : f32 to vector<8x4xf32>
    %113 = arith.mulf %112, %111 : vector<8x4xf32>
    %cst_36 = arith.constant 0.000000e+00 : f32
    %114 = vector.broadcast %cst_36 : f32 to vector<8x4xf32>
    %115 = arith.maximumf %113, %114 : vector<8x4xf32>
    %116 = math.absf %113 : vector<8x4xf32>
    %cst_37 = arith.constant 0.000000e+00 : f32
    %117 = vector.broadcast %cst_37 : f32 to vector<8x4xf32>
    %118 = arith.subf %117, %116 : vector<8x4xf32>
    %119 = math.exp %118 : vector<8x4xf32>
    %120 = math.log1p %119 : vector<8x4xf32>
    %121 = arith.addf %115, %120 : vector<8x4xf32>
    %cst_38 = arith.constant 0.693147182 : f32
    %122 = vector.broadcast %cst_38 : f32 to vector<8x4xf32>
    %123 = arith.subf %122, %111 : vector<8x4xf32>
    %124 = arith.subf %123, %121 : vector<8x4xf32>
    %cst_39 = arith.constant 2.000000e+00 : f32
    %125 = vector.broadcast %cst_39 : f32 to vector<8x4xf32>
    %126 = arith.mulf %125, %124 : vector<8x4xf32>
    %cst_40 = arith.constant dense<0.000000e+00> : vector<8xf32>
    %127 = vector.multi_reduction <add>, %126, %cst_40 [1] : vector<8x4xf32> to vector<8xf32>
    %128 = vector.shape_cast %127 : vector<8xf32> to vector<8x1xf32>
    %cst_41 = arith.constant dense<0.000000e+00> : vector<8x16xf32>
    %129 = tpu.matmul %111, %79, %cst_41 {dimension_numbers = #tpu.dot_dimension_numbers<[1], [0], [0], [1], [0, 0, 1, 1], [], []>} : vector<8x4xf32>, vector<4x16xf32>, vector<8x16xf32> -> vector<8x16xf32>
    %130 = arith.subf %129, %22 : vector<8x16xf32>
    %131 = arith.mulf %130, %30 : vector<8x16xf32>
    %cst_42 = arith.constant -5.000000e-01 : f32
    %132 = vector.broadcast %cst_42 : f32 to vector<8x16xf32>
    %133 = arith.mulf %132, %131 : vector<8x16xf32>
    %134 = arith.mulf %133, %131 : vector<8x16xf32>
    %135 = arith.subf %134, %27 : vector<8x16xf32>
    %cst_43 = arith.constant dense<0.000000e+00> : vector<8x4xf32>
    %136 = tpu.matmul %135, %92, %cst_43 {dimension_numbers = #tpu.dot_dimension_numbers<[1], [0], [0], [1], [0, 0, 1, 1], [], []>} : vector<8x16xf32>, vector<16x4xf32>, vector<8x4xf32> -> vector<8x4xf32>
    %cst_44 = arith.constant 3.67575407 : f32
    %137 = vector.broadcast %cst_44 : f32 to vector<8x4xf32>
    %138 = arith.subf %136, %137 : vector<8x4xf32>
    %cst_45 = arith.constant dense<0xFF800000> : vector<8xf32>
    %139 = vector.multi_reduction <maximumf>, %138, %cst_45 [1] : vector<8x4xf32> to vector<8xf32>
    %140 = vector.shape_cast %139 : vector<8xf32> to vector<8x1xf32>
    %141 = vector.broadcast %140 : vector<8x1xf32> to vector<8x4xf32>
    %142 = arith.subf %138, %141 : vector<8x4xf32>
    %143 = math.exp %142 : vector<8x4xf32>
    %cst_46 = arith.constant dense<0.000000e+00> : vector<8xf32>
    %144 = vector.multi_reduction <add>, %143, %cst_46 [1] : vector<8x4xf32> to vector<8xf32>
    %145 = vector.shape_cast %144 : vector<8xf32> to vector<8x1xf32>
    %146 = math.log %145 : vector<8x1xf32>
    %147 = arith.addf %140, %146 : vector<8x1xf32>
    %148 = arith.subf %147, %128 : vector<8x1xf32>
    %cst_47 = arith.constant 1.38629436 : f32
    %149 = vector.broadcast %cst_47 : f32 to vector<8x1xf32>
    %150 = arith.subf %148, %149 : vector<8x1xf32>
    %151 = math.tanh %111 : vector<8x4xf32>
    %cst_48 = arith.constant 1.000000e+00 : f32
    %152 = vector.broadcast %cst_48 : f32 to vector<8x4xf32>
    %153 = arith.mulf %152, %151 : vector<8x4xf32>
    %cst_49 = arith.constant dense<0.000000e+00> : vector<8x8xf32>
    %154 = tpu.matmul %153, %97, %cst_49 {dimension_numbers = #tpu.dot_dimension_numbers<[1], [0], [0], [1], [0, 0, 1, 1], [], []>} : vector<8x4xf32>, vector<4x8xf32>, vector<8x8xf32> -> vector<8x8xf32>
    %155 = vector.broadcast %150 : vector<8x1xf32> to vector<8x8xf32>
    %156 = vector.broadcast %102 : vector<1x8xf32> to vector<8x8xf32>
    %157 = arith.mulf %155, %156 : vector<8x8xf32>
    %158 = arith.addf %154, %157 : vector<8x8xf32>
    %c0_50 = arith.constant 0 : index
    %c0_51 = arith.constant 0 : index
    %159 = vector.load %arg9[%c0_50, %c0_51] : memref<8x8xf32, #tpu.memory_space<vmem>>, vector<8x8xf32>
    tpu.vector_store %arg9[%c0_50, %c0_51], %158 {strides = array<i32>} : memref<8x8xf32, #tpu.memory_space<vmem>>, vector<8x8xf32>,
    return
  }
  func.func @transform_0(%arg0: i32) -> (i32, i32) {
    %c0_i32 = arith.constant 0 : i32
    %c0_i32_0 = arith.constant 0 : i32
    return %arg0, %c0_i32 : i32, i32
  }
  func.func @transform_1(%arg0: i32) -> (i32, i32) {
    %c0_i32 = arith.constant 0 : i32
    %c0_i32_0 = arith.constant 0 : i32
    %c0_i32_1 = arith.constant 0 : i32
    return %c0_i32, %c0_i32_0 : i32, i32
  }
  func.func @transform_2(%arg0: i32) -> (i32, i32) {
    %c0_i32 = arith.constant 0 : i32
    %c0_i32_0 = arith.constant 0 : i32
    %c0_i32_1 = arith.constant 0 : i32
    return %c0_i32, %c0_i32_0 : i32, i32
  }
  func.func @transform_3(%arg0: i32) -> (i32, i32) {
    %c0_i32 = arith.constant 0 : i32
    %c0_i32_0 = arith.constant 0 : i32
    %c0_i32_1 = arith.constant 0 : i32
    return %c0_i32, %c0_i32_0 : i32, i32
  }
  func.func @transform_4(%arg0: i32) -> (i32, i32) {
    %c0_i32 = arith.constant 0 : i32
    %c0_i32_0 = arith.constant 0 : i32
    %c0_i32_1 = arith.constant 0 : i32
    return %c0_i32, %c0_i32_0 : i32, i32
  }
  func.func @transform_5(%arg0: i32) -> (i32, i32) {
    %c0_i32 = arith.constant 0 : i32
    %c0_i32_0 = arith.constant 0 : i32
    %c0_i32_1 = arith.constant 0 : i32
    return %c0_i32, %c0_i32_0 : i32, i32
  }
  func.func @transform_6(%arg0: i32) -> (i32, i32) {
    %c0_i32 = arith.constant 0 : i32
    %c0_i32_0 = arith.constant 0 : i32
    %c0_i32_1 = arith.constant 0 : i32
    return %c0_i32, %c0_i32_0 : i32, i32
  }
  func.func @transform_7(%arg0: i32) -> (i32, i32) {
    %c0_i32 = arith.constant 0 : i32
    %c0_i32_0 = arith.constant 0 : i32
    return %arg0, %c0_i32 : i32, i32
  }
  func.func @transform_8(%arg0: i32) -> (i32, i32) {
    %c0_i32 = arith.constant 0 : i32
    %c0_i32_0 = arith.constant 0 : i32
    return %arg0, %c0_i32 : i32, i32
  }
}

module attributes {stable_mosaic.version = 11 : i64} {
  func.func @actor_kernel(%arg0: i32, %arg1: memref<8x16xf32, #tpu.memory_space<vmem>>, %arg2: memref<16x128xbf16, #tpu.memory_space<vmem>>, %arg3: memref<1x128xf32, #tpu.memory_space<vmem>>, %arg4: memref<128x128xbf16, #tpu.memory_space<vmem>>, %arg5: memref<1x128xf32, #tpu.memory_space<vmem>>, %arg6: memref<128x128xf32, #tpu.memory_space<vmem>>, %arg7: memref<1x128xf32, #tpu.memory_space<vmem>>, %arg8: memref<8x8xf32, #tpu.memory_space<vmem>>, %arg9: memref<8x8xf32, #tpu.memory_space<vmem>>) attributes {dimension_semantics = [#tpu.dimension_semantics<parallel>], iteration_bounds = array<i64: 1>, scalar_prefetch = 0 : i64, scratch_operands = 0 : i64, tpu.core_type = #tpu.core_type<tc>, window_params = [{transform_indices = @transform_0, window_bounds = array<i64: 8, 16>}, {pipeline_mode = #tpu.pipeline_mode<synchronous>, transform_indices = @transform_1, window_bounds = array<i64: 16, 128>}, {pipeline_mode = #tpu.pipeline_mode<synchronous>, transform_indices = @transform_2, window_bounds = array<i64: 1, 128>}, {pipeline_mode = #tpu.pipeline_mode<synchronous>, transform_indices = @transform_3, window_bounds = array<i64: 128, 128>}, {pipeline_mode = #tpu.pipeline_mode<synchronous>, transform_indices = @transform_4, window_bounds = array<i64: 1, 128>}, {pipeline_mode = #tpu.pipeline_mode<synchronous>, transform_indices = @transform_5, window_bounds = array<i64: 128, 128>}, {pipeline_mode = #tpu.pipeline_mode<synchronous>, transform_indices = @transform_6, window_bounds = array<i64: 1, 128>}, {transform_indices = @transform_7, window_bounds = array<i64: 8, 8>}, {transform_indices = @transform_8, window_bounds = array<i64: 8, 8>}]} {
    %c0 = arith.constant 0 : index
    %c0_0 = arith.constant 0 : index
    %0 = vector.load %arg1[%c0, %c0_0] : memref<8x16xf32, #tpu.memory_space<vmem>>, vector<8x16xf32>
    %1 = arith.truncf %0 : vector<8x16xf32> to vector<8x16xbf16>
    %c0_1 = arith.constant 0 : index
    %c0_2 = arith.constant 0 : index
    %2 = vector.load %arg2[%c0_1, %c0_2] : memref<16x128xbf16, #tpu.memory_space<vmem>>, vector<16x128xbf16>
    %cst = arith.constant dense<0.000000e+00> : vector<8x128xf32>
    %3 = tpu.matmul %1, %2, %cst {dimension_numbers = #tpu.dot_dimension_numbers<[1], [0], [0], [1], [0, 0, 1, 1], [], []>} : vector<8x16xbf16>, vector<16x128xbf16>, vector<8x128xf32> -> vector<8x128xf32>
    %c0_3 = arith.constant 0 : index
    %c0_4 = arith.constant 0 : index
    %4 = vector.load %arg3[%c0_3, %c0_4] : memref<1x128xf32, #tpu.memory_space<vmem>>, vector<1x128xf32>
    %5 = vector.broadcast %4 : vector<1x128xf32> to vector<8x128xf32>
    %6 = arith.addf %3, %5 : vector<8x128xf32>
    %cst_5 = arith.constant 0.000000e+00 : f32
    %7 = vector.broadcast %cst_5 : f32 to vector<8x128xf32>
    %8 = arith.maximumf %6, %7 : vector<8x128xf32>
    %9 = arith.truncf %8 : vector<8x128xf32> to vector<8x128xbf16>
    %c0_6 = arith.constant 0 : index
    %c0_7 = arith.constant 0 : index
    %10 = vector.load %arg4[%c0_6, %c0_7] : memref<128x128xbf16, #tpu.memory_space<vmem>>, vector<128x128xbf16>
    %cst_8 = arith.constant dense<0.000000e+00> : vector<8x128xf32>
    %11 = tpu.matmul %9, %10, %cst_8 {dimension_numbers = #tpu.dot_dimension_numbers<[1], [0], [0], [1], [0, 0, 1, 1], [], []>} : vector<8x128xbf16>, vector<128x128xbf16>, vector<8x128xf32> -> vector<8x128xf32>
    %c0_9 = arith.constant 0 : index
    %c0_10 = arith.constant 0 : index
    %12 = vector.load %arg5[%c0_9, %c0_10] : memref<1x128xf32, #tpu.memory_space<vmem>>, vector<1x128xf32>
    %13 = vector.broadcast %12 : vector<1x128xf32> to vector<8x128xf32>
    %14 = arith.addf %11, %13 : vector<8x128xf32>
    %cst_11 = arith.constant 0.000000e+00 : f32
    %15 = vector.broadcast %cst_11 : f32 to vector<8x128xf32>
    %16 = arith.maximumf %14, %15 : vector<8x128xf32>
    %c0_12 = arith.constant 0 : index
    %c0_13 = arith.constant 0 : index
    %17 = vector.load %arg6[%c0_12, %c0_13] : memref<128x128xf32, #tpu.memory_space<vmem>>, vector<128x128xf32>
    %cst_14 = arith.constant dense<0.000000e+00> : vector<8x128xf32>
    %18 = tpu.matmul %16, %17, %cst_14 {dimension_numbers = #tpu.dot_dimension_numbers<[1], [0], [0], [1], [0, 0, 1, 1], [], []>} : vector<8x128xf32>, vector<128x128xf32>, vector<8x128xf32> -> vector<8x128xf32>
    %c0_15 = arith.constant 0 : index
    %c0_16 = arith.constant 0 : index
    %19 = vector.load %arg7[%c0_15, %c0_16] : memref<1x128xf32, #tpu.memory_space<vmem>>, vector<1x128xf32>
    %20 = vector.broadcast %19 : vector<1x128xf32> to vector<8x128xf32>
    %21 = arith.addf %18, %20 : vector<8x128xf32>
    %22 = vector.extract_strided_slice %21 {offsets = [0, 0], sizes = [8, 16], strides = [1, 1]} : vector<8x128xf32> to vector<8x16xf32>
    %23 = vector.extract_strided_slice %21 {offsets = [0, 16], sizes = [8, 16], strides = [1, 1]} : vector<8x128xf32> to vector<8x16xf32>
    %cst_17 = arith.constant -2.000000e+01 : f32
    %cst_18 = arith.constant 2.000000e+00 : f32
    %24 = vector.broadcast %cst_17 : f32 to vector<8x16xf32>
    %25 = arith.maximumf %24, %23 : vector<8x16xf32>
    %26 = vector.broadcast %cst_18 : f32 to vector<8x16xf32>
    %27 = arith.minimumf %26, %25 : vector<8x16xf32>
    %cst_19 = arith.constant 0.000000e+00 : f32
    %28 = vector.broadcast %cst_19 : f32 to vector<8x16xf32>
    %29 = arith.subf %28, %27 : vector<8x16xf32>
    %30 = math.exp %29 : vector<8x16xf32>
    %c0_20 = arith.constant 0 : index
    %c0_21 = arith.constant 0 : index
    %31 = vector.load %arg8[%c0_20, %c0_21] : memref<8x8xf32, #tpu.memory_space<vmem>>, vector<8x4xf32>
    %c0_22 = arith.constant 0 : index
    %c4 = arith.constant 4 : index
    %32 = vector.load %arg8[%c0_22, %c4] : memref<8x8xf32, #tpu.memory_space<vmem>>, vector<8x1xf32>
    %33 = tpu.iota {dimensions = array<i32: 1>} : vector<1x16xi32>
    %34 = arith.sitofp %33 : vector<1x16xi32> to vector<1x16xf32>
    %cst_23 = arith.constant 4.000000e+00 : f32
    %35 = vector.broadcast %cst_23 : f32 to vector<8x1xf32>
    %36 = arith.mulf %32, %35 : vector<8x1xf32>
    %37 = vector.broadcast %34 : vector<1x16xf32> to vector<8x16xf32>
    %38 = vector.broadcast %36 : vector<8x1xf32> to vector<8x16xf32>
    %39 = arith.cmpf oge, %37, %38 : vector<8x16xf32>
    %cst_24 = arith.constant 4.000000e+00 : f32
    %40 = vector.broadcast %cst_24 : f32 to vector<8x1xf32>
    %41 = arith.addf %36, %40 : vector<8x1xf32>
    %42 = vector.broadcast %34 : vector<1x16xf32> to vector<8x16xf32>
    %43 = vector.broadcast %41 : vector<8x1xf32> to vector<8x16xf32>
    %44 = arith.cmpf olt, %42, %43 : vector<8x16xf32>
    %45 = arith.andi %39, %44 : vector<8x16xi1>
    %46 = tpu.iota {dimensions = array<i32: 0>} : vector<16x4xi32>
    %47 = tpu.iota {dimensions = array<i32: 1>} : vector<16x4xi32>
    %48 = arith.cmpi eq, %46, %47 : vector<16x4xi32>
    %c4_i32 = arith.constant 4 : i32
    %49 = vector.broadcast %c4_i32 : i32 to vector<16x4xi32>
    %50 = arith.addi %47, %49 : vector<16x4xi32>
    %51 = arith.cmpi eq, %46, %50 : vector<16x4xi32>
    %52 = arith.ori %48, %51 : vector<16x4xi1>
    %c8_i32 = arith.constant 8 : i32
    %53 = vector.broadcast %c8_i32 : i32 to vector<16x4xi32>
    %54 = arith.addi %47, %53 : vector<16x4xi32>
    %55 = arith.cmpi eq, %46, %54 : vector<16x4xi32>
    %56 = arith.ori %52, %55 : vector<16x4xi1>
    %c12_i32 = arith.constant 12 : i32
    %57 = vector.broadcast %c12_i32 : i32 to vector<16x4xi32>
    %58 = arith.addi %47, %57 : vector<16x4xi32>
    %59 = arith.cmpi eq, %46, %58 : vector<16x4xi32>
    %60 = arith.ori %56, %59 : vector<16x4xi1>
    %61 = arith.extui %60 : vector<16x4xi1> to vector<16x4xi32>
    %62 = arith.sitofp %61 : vector<16x4xi32> to vector<16x4xf32>
    %63 = tpu.iota {dimensions = array<i32: 0>} : vector<4x16xi32>
    %64 = tpu.iota {dimensions = array<i32: 1>} : vector<4x16xi32>
    %65 = arith.cmpi eq, %64, %63 : vector<4x16xi32>
    %c4_i32_25 = arith.constant 4 : i32
    %66 = vector.broadcast %c4_i32_25 : i32 to vector<4x16xi32>
    %67 = arith.addi %63, %66 : vector<4x16xi32>
    %68 = arith.cmpi eq, %64, %67 : vector<4x16xi32>
    %69 = arith.ori %65, %68 : vector<4x16xi1>
    %c8_i32_26 = arith.constant 8 : i32
    %70 = vector.broadcast %c8_i32_26 : i32 to vector<4x16xi32>
    %71 = arith.addi %63, %70 : vector<4x16xi32>
    %72 = arith.cmpi eq, %64, %71 : vector<4x16xi32>
    %73 = arith.ori %69, %72 : vector<4x16xi1>
    %c12_i32_27 = arith.constant 12 : i32
    %74 = vector.broadcast %c12_i32_27 : i32 to vector<4x16xi32>
    %75 = arith.addi %63, %74 : vector<4x16xi32>
    %76 = arith.cmpi eq, %64, %75 : vector<4x16xi32>
    %77 = arith.ori %73, %76 : vector<4x16xi1>
    %78 = arith.extui %77 : vector<4x16xi1> to vector<4x16xi32>
    %79 = arith.sitofp %78 : vector<4x16xi32> to vector<4x16xf32>
    %80 = tpu.iota {dimensions = array<i32: 0>} : vector<16x4xi32>
    %81 = tpu.iota {dimensions = array<i32: 1>} : vector<16x4xi32>
    %c4_i32_28 = arith.constant 4 : i32
    %82 = vector.broadcast %c4_i32_28 : i32 to vector<16x4xi32>
    %83 = arith.muli %81, %82 : vector<16x4xi32>
    %84 = arith.cmpi sge, %80, %83 : vector<16x4xi32>
    %c1_i32 = arith.constant 1 : i32
    %85 = vector.broadcast %c1_i32 : i32 to vector<16x4xi32>
    %86 = arith.addi %81, %85 : vector<16x4xi32>
    %c4_i32_29 = arith.constant 4 : i32
    %87 = vector.broadcast %c4_i32_29 : i32 to vector<16x4xi32>
    %88 = arith.muli %86, %87 : vector<16x4xi32>
    %89 = arith.cmpi slt, %80, %88 : vector<16x4xi32>
    %90 = arith.andi %84, %89 : vector<16x4xi1>
    %91 = arith.extui %90 : vector<16x4xi1> to vector<16x4xi32>
    %92 = arith.sitofp %91 : vector<16x4xi32> to vector<16x4xf32>
    %93 = tpu.iota {dimensions = array<i32: 0>} : vector<4x8xi32>
    %94 = tpu.iota {dimensions = array<i32: 1>} : vector<4x8xi32>
    %95 = arith.cmpi eq, %93, %94 : vector<4x8xi32>
    %96 = arith.extui %95 : vector<4x8xi1> to vector<4x8xi32>
    %97 = arith.sitofp %96 : vector<4x8xi32> to vector<4x8xf32>
    %98 = tpu.iota {dimensions = array<i32: 1>} : vector<1x8xi32>
    %c4_i32_30 = arith.constant 4 : i32
    %99 = vector.broadcast %c4_i32_30 : i32 to vector<1x8xi32>
    %100 = arith.cmpi eq, %98, %99 : vector<1x8xi32>
    %101 = arith.extui %100 : vector<1x8xi1> to vector<1x8xi32>
    %102 = arith.sitofp %101 : vector<1x8xi32> to vector<1x8xf32>
    %cst_31 = arith.constant 0.000000e+00 : f32
    %103 = vector.broadcast %cst_31 : f32 to vector<8x16xf32>
    %104 = arith.select %45, %22, %103 : vector<8x16xi1>, vector<8x16xf32>
    %cst_32 = arith.constant dense<0.000000e+00> : vector<8x4xf32>
    %105 = tpu.matmul %104, %62, %cst_32 {dimension_numbers = #tpu.dot_dimension_numbers<[1], [0], [0], [1], [0, 0, 1, 1], [], []>} : vector<8x16xf32>, vector<16x4xf32>, vector<8x4xf32> -> vector<8x4xf32>
    %cst_33 = arith.constant 0.000000e+00 : f32
    %106 = vector.broadcast %cst_33 : f32 to vector<8x16xf32>
    %107 = arith.select %45, %27, %106 : vector<8x16xi1>, vector<8x16xf32>
    %cst_34 = arith.constant dense<0.000000e+00> : vector<8x4xf32>
    %108 = tpu.matmul %107, %62, %cst_34 {dimension_numbers = #tpu.dot_dimension_numbers<[1], [0], [0], [1], [0, 0, 1, 1], [], []>} : vector<8x16xf32>, vector<16x4xf32>, vector<8x4xf32> -> vector<8x4xf32>
    %109 = math.exp %108 : vector<8x4xf32>
    %110 = arith.mulf %109, %31 : vector<8x4xf32>
    %111 = arith.addf %105, %110 : vector<8x4xf32>
    %cst_35 = arith.constant -2.000000e+00 : f32
    %112 = vector.broadcast %cst_35 : f32 to vector<8x4xf32>
    %113 = arith.mulf %112, %111 : vector<8x4xf32>
    %cst_36 = arith.constant 0.000000e+00 : f32
    %114 = vector.broadcast %cst_36 : f32 to vector<8x4xf32>
    %115 = arith.maximumf %113, %114 : vector<8x4xf32>
    %116 = math.absf %113 : vector<8x4xf32>
    %cst_37 = arith.constant 0.000000e+00 : f32
    %117 = vector.broadcast %cst_37 : f32 to vector<8x4xf32>
    %118 = arith.subf %117, %116 : vector<8x4xf32>
    %119 = math.exp %118 : vector<8x4xf32>
    %120 = math.log1p %119 : vector<8x4xf32>
    %121 = arith.addf %115, %120 : vector<8x4xf32>
    %cst_38 = arith.constant 0.693147182 : f32
    %122 = vector.broadcast %cst_38 : f32 to vector<8x4xf32>
    %123 = arith.subf %122, %111 : vector<8x4xf32>
    %124 = arith.subf %123, %121 : vector<8x4xf32>
    %cst_39 = arith.constant 2.000000e+00 : f32
    %125 = vector.broadcast %cst_39 : f32 to vector<8x4xf32>
    %126 = arith.mulf %125, %124 : vector<8x4xf32>
    %cst_40 = arith.constant dense<0.000000e+00> : vector<8xf32>
    %127 = vector.multi_reduction <add>, %126, %cst_40 [1] : vector<8x4xf32> to vector<8xf32>
    %128 = vector.shape_cast %127 : vector<8xf32> to vector<8x1xf32>
    %cst_41 = arith.constant dense<0.000000e+00> : vector<8x16xf32>
    %129 = tpu.matmul %111, %79, %cst_41 {dimension_numbers = #tpu.dot_dimension_numbers<[1], [0], [0], [1], [0, 0, 1, 1], [], []>} : vector<8x4xf32>, vector<4x16xf32>, vector<8x16xf32> -> vector<8x16xf32>
    %130 = arith.subf %129, %22 : vector<8x16xf32>
    %131 = arith.mulf %130, %30 : vector<8x16xf32>
    %cst_42 = arith.constant -5.000000e-01 : f32
    %132 = vector.broadcast %cst_42 : f32 to vector<8x16xf32>
    %133 = arith.mulf %132, %131 : vector<8x16xf32>
    %134 = arith.mulf %133, %131 : vector<8x16xf32>
    %135 = arith.subf %134, %27 : vector<8x16xf32>
    %cst_43 = arith.constant dense<0.000000e+00> : vector<8x4xf32>
    %136 = tpu.matmul %135, %92, %cst_43 {dimension_numbers = #tpu.dot_dimension_numbers<[1], [0], [0], [1], [0, 0, 1, 1], [], []>} : vector<8x16xf32>, vector<16x4xf32>, vector<8x4xf32> -> vector<8x4xf32>
    %cst_44 = arith.constant 3.67575407 : f32
    %137 = vector.broadcast %cst_44 : f32 to vector<8x4xf32>
    %138 = arith.subf %136, %137 : vector<8x4xf32>
    %cst_45 = arith.constant dense<0xFF800000> : vector<8xf32>
    %139 = vector.multi_reduction <maximumf>, %138, %cst_45 [1] : vector<8x4xf32> to vector<8xf32>
    %140 = vector.shape_cast %139 : vector<8xf32> to vector<8x1xf32>
    %141 = vector.broadcast %140 : vector<8x1xf32> to vector<8x4xf32>
    %142 = arith.subf %138, %141 : vector<8x4xf32>
    %143 = math.exp %142 : vector<8x4xf32>
    %cst_46 = arith.constant dense<0.000000e+00> : vector<8xf32>
    %144 = vector.multi_reduction <add>, %143, %cst_46 [1] : vector<8x4xf32> to vector<8xf32>
    %145 = vector.shape_cast %144 : vector<8xf32> to vector<8x1xf32>
    %146 = math.log %145 : vector<8x1xf32>
    %147 = arith.addf %140, %146 : vector<8x1xf32>
    %148 = arith.subf %147, %128 : vector<8x1xf32>
    %cst_47 = arith.constant 1.38629436 : f32
    %149 = vector.broadcast %cst_47 : f32 to vector<8x1xf32>
    %150 = arith.subf %148, %149 : vector<8x1xf32>
    %151 = math.tanh %111 : vector<8x4xf32>
    %cst_48 = arith.constant 1.000000e+00 : f32
    %152 = vector.broadcast %cst_48 : f32 to vector<8x4xf32>
    %153 = arith.mulf %152, %151 : vector<8x4xf32>
    %cst_49 = arith.constant dense<0.000000e+00> : vector<8x8xf32>
    %154 = tpu.matmul %153, %97, %cst_49 {dimension_numbers = #tpu.dot_dimension_numbers<[1], [0], [0], [1], [0, 0, 1, 1], [], []>} : vector<8x4xf32>, vector<4x8xf32>, vector<8x8xf32> -> vector<8x8xf32>
    %155 = vector.broadcast %150 : vector<8x1xf32> to vector<8x8xf32>
    %156 = vector.broadcast %102 : vector<1x8xf32> to vector<8x8xf32>
    %157 = arith.mulf %155, %156 : vector<8x8xf32>
    %158 = arith.addf %154, %157 : vector<8x8xf32>
    %c0_50 = arith.constant 0 : index
    %c0_51 = arith.constant 0 : index
    %159 = vector.load %arg9[%c0_50, %c0_51] : memref<8x8xf32, #tpu.memory_space<vmem>>, vector<8x8xf32>
    tpu.vector_store %arg9[%c0_50, %c0_51], %158 {strides = array<i32>} : memref<8x8xf32, #tpu.memory_space<vmem>>, vector<8x8xf32>,
    return
  }
  func.func @transform_0(%arg0: i32) -> (i32, i32) {
    %c0_i32 = arith.constant 0 : i32
    %c0_i32_0 = arith.constant 0 : i32
    return %arg0, %c0_i32 : i32, i32
  }
  func.func @transform_1(%arg0: i32) -> (i32, i32) {
    %c0_i32 = arith.constant 0 : i32
    %c0_i32_0 = arith.constant 0 : i32
    %c0_i32_1 = arith.constant 0 : i32
    return %c0_i32, %c0_i32_0 : i32, i32
  }
  func.func @transform_2(%arg0: i32) -> (i32, i32) {
    %c0_i32 = arith.constant 0 : i32
    %c0_i32_0 = arith.constant 0 : i32
    %c0_i32_1 = arith.constant 0 : i32
    return %c0_i32, %c0_i32_0 : i32, i32
  }
  func.func @transform_3(%arg0: i32) -> (i32, i32) {
    %c0_i32 = arith.constant 0 : i32
    %c0_i32_0 = arith.constant 0 : i32
    %c0_i32_1 = arith.constant 0 : i32
    return %c0_i32, %c0_i32_0 : i32, i32
  }
  func.func @transform_4(%arg0: i32) -> (i32, i32) {
    %c0_i32 = arith.constant 0 : i32
    %c0_i32_0 = arith.constant 0 : i32
    %c0_i32_1 = arith.constant 0 : i32
    return %c0_i32, %c0_i32_0 : i32, i32
  }
  func.func @transform_5(%arg0: i32) -> (i32, i32) {
    %c0_i32 = arith.constant 0 : i32
    %c0_i32_0 = arith.constant 0 : i32
    %c0_i32_1 = arith.constant 0 : i32
    return %c0_i32, %c0_i32_0 : i32, i32
  }
  func.func @transform_6(%arg0: i32) -> (i32, i32) {
    %c0_i32 = arith.constant 0 : i32
    %c0_i32_0 = arith.constant 0 : i32
    %c0_i32_1 = arith.constant 0 : i32
    return %c0_i32, %c0_i32_0 : i32, i32
  }
  func.func @transform_7(%arg0: i32) -> (i32, i32) {
    %c0_i32 = arith.constant 0 : i32
    %c0_i32_0 = arith.constant 0 : i32
    return %arg0, %c0_i32 : i32, i32
  }
  func.func @transform_8(%arg0: i32) -> (i32, i32) {
    %c0_i32 = arith.constant 0 : i32
    %c0_i32_0 = arith.constant 0 : i32
    return %arg0, %c0_i32 : i32, i32
  }
}

</mosaic_0001>

<llo_original>
// kernel: tpu_custom_call.1
$region0: #{tpu_custom_call.1}
  #allocation0 [shape = 'u32[]', space=smem, size = 0x4, offset = 0x4, fixed_abs, tag = 'smem constant byte address 0x4 - core index']
  #allocation1 [shape = 'u32[144,128]{1,0:T(1,128)}', space=vmem, size = 0x12000, scoped, tag = 'internal scratch']
  %s0 = inlined_call_operand.hbm [shape: f32[8,16], index: 0, kind: input, shape index: {}]
  %s1 = inlined_call_operand.hbm [shape: bf16[16,128], index: 1, kind: input, shape index: {}]
  %s2 = inlined_call_operand.vmem [shape: f32[1,128], index: 2, kind: input, shape index: {}]
  %s3 = inlined_call_operand.hbm [shape: bf16[128,128], index: 3, kind: input, shape index: {}]
  %s4 = inlined_call_operand.vmem [shape: f32[1,128], index: 4, kind: input, shape index: {}]
  %s5 = inlined_call_operand.hbm [shape: f32[128,128], index: 5, kind: input, shape index: {}]
  %s6 = inlined_call_operand.vmem [shape: f32[1,128], index: 6, kind: input, shape index: {}]
  %s7 = inlined_call_operand.vmem [shape: f32[8,8], index: 7, kind: input, shape index: {}]
  %s8 = inlined_call_operand.hbm [shape: f32[8,8], index: 8, kind: output, shape index: {}]
  %s9 = sld [smem:[#allocation0]]
  $region58: #{tpu_custom_call.1} parent=0
    _
  %s11 = ssub.s32 1, %s9
  %s12 = scalar_select 0, %s11, %s9
  $region1: #{tpu_custom_call.1} parent=0
    #allocation2 [shape = 'u8[4096]{0}', space=vmem, size = 0x1000, scoped, tag = 'input window, operand 0, single buffered']
    #allocation3 [shape = 's32[1]{0}', space=sflag, size = 0x4, scoped, tag = 'scoped memory for tpu_custom_call.1']
    #allocation4 [shape = 's32[1]{0}', space=sflag, size = 0x4, scoped, tag = 'scoped memory for tpu_custom_call.1']
    #allocation5 [shape = 'u8[4096]{0}', space=vmem, size = 0x1000, scoped, tag = 'input window, operand 1, single buffered']
    #allocation6 [shape = 's32[1]{0}', space=sflag, size = 0x4, scoped, tag = 'scoped memory for tpu_custom_call.1']
    #allocation7 [shape = 'u8[32768]{0}', space=vmem, size = 0x8000, scoped, tag = 'input window, operand 3, single buffered']
    #allocation8 [shape = 'u8[65536]{0}', space=vmem, size = 0x10000, scoped, tag = 'input window, operand 5, single buffered']
    #allocation9 [shape = 's32[1]{0}', space=sflag, size = 0x4, scoped, tag = 'scoped memory for tpu_custom_call.1']
    #allocation10 [shape = 'u8[4096]{0}', space=vmem, size = 0x1000, scoped, tag = 'output window, operand 0, single buffered']
    %13 = vsyncpa [#allocation3], 0
    %14 = vsyncpa [#allocation6], 0
    %15 = vsyncpa [#allocation9], 0
    %16 = vsyncpa [#allocation4], 0
    // Predicated region
    $region2: #{tpu_custom_call.1} parent=1 // pred_check
      _
    $region3: #{tpu_custom_call.1} parent=1 // pred_check_branch
      %18 = sbr.rel (0) target = $region5
    $region4: #{tpu_custom_call.1} parent=1 // pred_region
      %s20 = ssub.s32 128, 128
      %21 = vsyncadd [#allocation3], %s20
      %s23 = sshll.u32 [#allocation2], 4
      %s24 = int_to_ptr.vmem [resolvable:$true] %s23
      %26 = dma.hbm_to_vmem [thread:$0]  %s0, 128, %s24, [#allocation3]
    $region5: #{tpu_custom_call.1} parent=1 // pred_fallthru
      _
    // Predicated region
    $region6: #{tpu_custom_call.1} parent=1 // pred_check
      _
    $region7: #{tpu_custom_call.1} parent=1 // pred_check_branch
      %28 = sbr.rel (0) target = $region9
    $region8: #{tpu_custom_call.1} parent=1 // pred_region
      %s30 = ssub.s32 128, 128
      %31 = vsyncadd [#allocation6], %s30
      %s32 = sshll.u32 [#allocation5], 4
      %s33 = int_to_ptr.vmem [resolvable:$true] %s32
      %38 = dma.hbm_to_vmem [thread:$0]  %s1, 128, %s33, [#allocation6], 64, 64, 4
    $region9: #{tpu_custom_call.1} parent=1 // pred_fallthru
      _
    // Predicated region
    $region10: #{tpu_custom_call.1} parent=1 // pred_check
      _
    $region11: #{tpu_custom_call.1} parent=1 // pred_check_branch
      %40 = sbr.rel (0) target = $region13
    $region12: #{tpu_custom_call.1} parent=1 // pred_region
      _
    $region13: #{tpu_custom_call.1} parent=1 // pred_fallthru
      _
    // Predicated region
    $region14: #{tpu_custom_call.1} parent=1 // pred_check
      _
    $region15: #{tpu_custom_call.1} parent=1 // pred_check_branch
      %42 = sbr.rel (0) target = $region17
    $region16: #{tpu_custom_call.1} parent=1 // pred_region
      %s44 = ssub.s32 1024, 1024
      %45 = vsyncadd [#allocation6], %s44
      %s46 = sshll.u32 [#allocation7], 4
      %s47 = int_to_ptr.vmem [resolvable:$true] %s46
      %52 = dma.hbm_to_vmem [thread:$0]  %s3, 1024, %s47, [#allocation6], 64, 64, 4
    $region17: #{tpu_custom_call.1} parent=1 // pred_fallthru
      _
    // Predicated region
    $region18: #{tpu_custom_call.1} parent=1 // pred_check
      _
    $region19: #{tpu_custom_call.1} parent=1 // pred_check_branch
      %54 = sbr.rel (0) target = $region21
    $region20: #{tpu_custom_call.1} parent=1 // pred_region
      _
    $region21: #{tpu_custom_call.1} parent=1 // pred_fallthru
      _
    // Predicated region
    $region22: #{tpu_custom_call.1} parent=1 // pred_check
      _
    $region23: #{tpu_custom_call.1} parent=1 // pred_check_branch
      %56 = sbr.rel (0) target = $region25
    $region24: #{tpu_custom_call.1} parent=1 // pred_region
      %s58 = ssub.s32 2048, 2048
      %59 = vsyncadd [#allocation9], %s58
      %s60 = sshll.u32 [#allocation8], 4
      %s61 = int_to_ptr.vmem [resolvable:$true] %s60
      %66 = dma.hbm_to_vmem [thread:$0]  %s5, 2048, %s61, [#allocation9], 128, 128, 8
    $region25: #{tpu_custom_call.1} parent=1 // pred_fallthru
      _
    // Predicated region
    $region26: #{tpu_custom_call.1} parent=1 // pred_check
      _
    $region27: #{tpu_custom_call.1} parent=1 // pred_check_branch
      %68 = sbr.rel (0) target = $region29
    $region28: #{tpu_custom_call.1} parent=1 // pred_region
      _
    $region29: #{tpu_custom_call.1} parent=1 // pred_fallthru
      _
    // Predicated region
    $region30: #{tpu_custom_call.1} parent=1 // pred_check
      _
    $region31: #{tpu_custom_call.1} parent=1 // pred_check_branch
      %70 = sbr.rel (0) target = $region33
    $region32: #{tpu_custom_call.1} parent=1 // pred_region
      _
    $region33: #{tpu_custom_call.1} parent=1 // pred_fallthru
      _
    // Predicated region
    $region34: #{tpu_custom_call.1} parent=1 // pred_check
      _
    $region35: #{tpu_custom_call.1} parent=1 // pred_check_branch
      %72 = sbr.rel (0) target = $region37
    $region36: #{tpu_custom_call.1} parent=1 // pred_region
      %73 = dma.done [#allocation3], 128
    $region37: #{tpu_custom_call.1} parent=1 // pred_fallthru
      _
    // Predicated region
    $region38: #{tpu_custom_call.1} parent=1 // pred_check
      _
    $region39: #{tpu_custom_call.1} parent=1 // pred_check_branch
      %75 = sbr.rel (0) target = $region41
    $region40: #{tpu_custom_call.1} parent=1 // pred_region
      %76 = dma.done [#allocation6], 128
    $region41: #{tpu_custom_call.1} parent=1 // pred_fallthru
      _
    // Predicated region
    $region42: #{tpu_custom_call.1} parent=1 // pred_check
      _
    $region43: #{tpu_custom_call.1} parent=1 // pred_check_branch
      %78 = sbr.rel (0) target = $region45
    $region44: #{tpu_custom_call.1} parent=1 // pred_region
      %79 = dma.done [#allocation6], 1024
    $region45: #{tpu_custom_call.1} parent=1 // pred_fallthru
      _
    // Predicated region
    $region46: #{tpu_custom_call.1} parent=1 // pred_check
      _
    $region47: #{tpu_custom_call.1} parent=1 // pred_check_branch
      %81 = sbr.rel (0) target = $region49
    $region48: #{tpu_custom_call.1} parent=1 // pred_region
      %82 = dma.done [#allocation9], 2048
    $region49: #{tpu_custom_call.1} parent=1 // pred_fallthru
      _
    %v84 = vld [vmem:[#allocation2] sm:$0xff]
    %v85 = vpack.c.bf16 %v84, %v84
    %v86 = vld [vmem:[#allocation5] sm:$0xf]
    %v87 = vld [vmem:[#allocation5 + $0x4] sm:$0xf]
    %v88 = vld [vmem:[%s2] sm:$0x1]
    %v90 = vlaneseq
    %v91 = vshrl.u32 %v90, 7
    %v92 = vsub.s32 0, %v91
    %v93 = vrot.slane %v88, %v92
    %v97 = vunpack.c.l.b16 %v86
    %v98 = vunpack.c.l.b16 %v87
    %v99 = vpack.c.b16 %v98, %v97
    %vm101 = vcmask 130048
    %v103 = vsel %vm101, %v85, 0
    %105 = vmatprep.subr.bf16.mxu0 0
    %106 = vmatpush1.bf16.msra.mxu0 %v99
    %107 = vmatprep.subr.bf16.mxu0 0
    %108 = vmatpush1.bf16.msra.mxu0 0
    %109 = vmatprep.subr.bf16.mxu0 0
    %110 = vmatpush1.bf16.msra.mxu0 0
    %111 = vmatprep.subr.bf16.mxu0 0
    %112 = vmatpush1.bf16.msra.mxu0 0
    %113 = vmatprep.subr.bf16.mxu0 0
    %114 = vmatpush1.bf16.msra.mxu0 0
    %115 = vmatprep.subr.bf16.mxu0 0
    %116 = vmatpush1.bf16.msra.mxu0 0
    %117 = vmatprep.subr.bf16.mxu0 0
    %118 = vmatpush1.bf16.msra.mxu0 0
    %119 = vmatprep.subr.bf16.mxu0 0
    %120 = vmatpush1.bf16.msra.mxu0 0
    %121 = vmatprep.subr.bf16.mxu0 0
    %122 = vmatpush1.bf16.msra.mxu0 0
    %123 = vmatprep.subr.bf16.mxu0 0
    %124 = vmatpush1.bf16.msra.mxu0 0
    %125 = vmatprep.subr.bf16.mxu0 0
    %126 = vmatpush1.bf16.msra.mxu0 0
    %127 = vmatprep.subr.bf16.mxu0 0
    %128 = vmatpush1.bf16.msra.mxu0 0
    %129 = vmatprep.subr.bf16.mxu0 0
    %130 = vmatpush1.bf16.msra.mxu0 0
    %131 = vmatprep.subr.bf16.mxu0 0
    %132 = vmatpush1.bf16.msra.mxu0 0
    %133 = vmatprep.subr.bf16.mxu0 0
    %134 = vmatpush1.bf16.msra.mxu0 0
    %135 = vmatprep.subr.bf16.mxu0 0
    %136 = vmatpush1.bf16.msra.mxu0 0
    %137 = vmatprep.mubr.bf16.mxu0 0
    %138 = vmatmul.mubr.bf16.gmra.mrb[0].mxu0 %v103
    %v139 = vpop.f32.mrb[0].mxu0
    %v140 = vadd.f32 %v93, %v139
    %v141 = vpop.f32.mrb[0].mxu0
    %v142 = vpop.f32.mrb[0].mxu0
    %v143 = vpop.f32.mrb[0].mxu0
    %144 = vdwg.mxu0
    %v145 = vmax.f32 %v140, 0.0
    %v146 = vpack.c.bf16 %v145, %v145
    %v147 = vld [vmem:[#allocation7] sm:$0xf]
    %v148 = vld [vmem:[#allocation7 + $0x4] sm:$0xf]
    %v149 = vld [vmem:[#allocation7 + $0x8] sm:$0xf]
    %v150 = vld [vmem:[#allocation7 + $0xc] sm:$0xf]
    %v151 = vld [vmem:[#allocation7 + $0x10] sm:$0xf]
    %v152 = vld [vmem:[#allocation7 + $0x14] sm:$0xf]
    %v153 = vld [vmem:[#allocation7 + $0x18] sm:$0xf]
    %v154 = vld [vmem:[#allocation7 + $0x1c] sm:$0xf]
    %v155 = vld [vmem:[#allocation7 + $0x20] sm:$0xf]
    %v156 = vld [vmem:[#allocation7 + $0x24] sm:$0xf]
    %v157 = vld [vmem:[#allocation7 + $0x28] sm:$0xf]
    %v158 = vld [vmem:[#allocation7 + $0x2c] sm:$0xf]
    %v159 = vld [vmem:[#allocation7 + $0x30] sm:$0xf]
    %v160 = vld [vmem:[#allocation7 + $0x34] sm:$0xf]
    %v161 = vld [vmem:[#allocation7 + $0x38] sm:$0xf]
    %v162 = vld [vmem:[#allocation7 + $0x3c] sm:$0xf]
    %v163 = vld [vmem:[%s4] sm:$0x1]
    %v165 = vlaneseq
    %v166 = vshrl.u32 %v165, 7
    %v167 = vsub.s32 0, %v166
    %v168 = vrot.slane %v163, %v167
    %v186 = vunpack.c.l.b16 %v147
    %v187 = vunpack.c.l.b16 %v148
    %v188 = vunpack.c.l.b16 %v149
    %v189 = vunpack.c.l.b16 %v150
    %v190 = vunpack.c.l.b16 %v151
    %v191 = vunpack.c.l.b16 %v152
    %v192 = vunpack.c.l.b16 %v153
    %v193 = vunpack.c.l.b16 %v154
    %v194 = vunpack.c.l.b16 %v155
    %v195 = vunpack.c.l.b16 %v156
    %v196 = vunpack.c.l.b16 %v157
    %v197 = vunpack.c.l.b16 %v158
    %v198 = vunpack.c.l.b16 %v159
    %v199 = vunpack.c.l.b16 %v160
    %v200 = vunpack.c.l.b16 %v161
    %v201 = vunpack.c.l.b16 %v162
    %v202 = vpack.c.b16 %v187, %v186
    %v203 = vpack.c.b16 %v189, %v188
    %v204 = vpack.c.b16 %v191, %v190
    %v205 = vpack.c.b16 %v193, %v192
    %v206 = vpack.c.b16 %v195, %v194
    %v207 = vpack.c.b16 %v197, %v196
    %v208 = vpack.c.b16 %v199, %v198
    %v209 = vpack.c.b16 %v201, %v200
    %218 = vmatprep.subr.bf16.mxu0 0
    %219 = vmatpush1.bf16.msra.mxu0 %v202
    %220 = vmatprep.subr.bf16.mxu0 0
    %221 = vmatpush1.bf16.msra.mxu0 %v203
    %222 = vmatprep.subr.bf16.mxu0 0
    %223 = vmatpush1.bf16.msra.mxu0 %v204
    %224 = vmatprep.subr.bf16.mxu0 0
    %225 = vmatpush1.bf16.msra.mxu0 %v205
    %226 = vmatprep.subr.bf16.mxu0 0
    %227 = vmatpush1.bf16.msra.mxu0 %v206
    %228 = vmatprep.subr.bf16.mxu0 0
    %229 = vmatpush1.bf16.msra.mxu0 %v207
    %230 = vmatprep.subr.bf16.mxu0 0
    %231 = vmatpush1.bf16.msra.mxu0 %v208
    %232 = vmatprep.subr.bf16.mxu0 0
    %233 = vmatpush1.bf16.msra.mxu0 %v209
    %234 = vmatprep.subr.bf16.mxu0 0
    %235 = vmatpush1.bf16.msra.mxu0 0
    %236 = vmatprep.subr.bf16.mxu0 0
    %237 = vmatpush1.bf16.msra.mxu0 0
    %238 = vmatprep.subr.bf16.mxu0 0
    %239 = vmatpush1.bf16.msra.mxu0 0
    %240 = vmatprep.subr.bf16.mxu0 0
    %241 = vmatpush1.bf16.msra.mxu0 0
    %242 = vmatprep.subr.bf16.mxu0 0
    %243 = vmatpush1.bf16.msra.mxu0 0
    %244 = vmatprep.subr.bf16.mxu0 0
    %245 = vmatpush1.bf16.msra.mxu0 0
    %246 = vmatprep.subr.bf16.mxu0 0
    %247 = vmatpush1.bf16.msra.mxu0 0
    %248 = vmatprep.subr.bf16.mxu0 0
    %249 = vmatpush1.bf16.msra.mxu0 0
    %250 = vmatprep.mubr.bf16.mxu0 0
    %251 = vmatmul.mubr.bf16.gmra.mrb[0].mxu0 %v146
    %v252 = vpop.f32.mrb[0].mxu0
    %v253 = vadd.f32 %v168, %v252
    %v254 = vpop.f32.mrb[0].mxu0
    %v255 = vpop.f32.mrb[0].mxu0
    %v256 = vpop.f32.mrb[0].mxu0
    %257 = vdwg.mxu0
    %v258 = vmax.f32 %v253, 0.0
    %v259 = vld [vmem:[#allocation8] sm:$0xff]
    %v260 = vld [vmem:[#allocation8 + $0x8] sm:$0xff]
    %v261 = vld [vmem:[#allocation8 + $0x10] sm:$0xff]
    %v262 = vld [vmem:[#allocation8 + $0x18] sm:$0xff]
    %v263 = vld [vmem:[#allocation8 + $0x20] sm:$0xff]
    %v264 = vld [vmem:[#allocation8 + $0x28] sm:$0xff]
    %v265 = vld [vmem:[#allocation8 + $0x30] sm:$0xff]
    %v266 = vld [vmem:[#allocation8 + $0x38] sm:$0xff]
    %v267 = vld [vmem:[#allocation8 + $0x40] sm:$0xff]
    %v268 = vld [vmem:[#allocation8 + $0x48] sm:$0xff]
    %v269 = vld [vmem:[#allocation8 + $0x50] sm:$0xff]
    %v270 = vld [vmem:[#allocation8 + $0x58] sm:$0xff]
    %v271 = vld [vmem:[#allocation8 + $0x60] sm:$0xff]
    %v272 = vld [vmem:[#allocation8 + $0x68] sm:$0xff]
    %v273 = vld [vmem:[#allocation8 + $0x70] sm:$0xff]
    %v274 = vld [vmem:[#allocation8 + $0x78] sm:$0xff]
    %v275 = vld [vmem:[%s6] sm:$0x1]
    %v277 = vlaneseq
    %v278 = vshrl.u32 %v277, 7
    %v279 = vsub.s32 0, %v278
    %v280 = vrot.slane %v275, %v279
    %282 = vmatprep.subr.mxu0 0.0
    %283 = vmatpush1.msra.mxu0 %v259
    %284 = vmatprep.subr.mxu0 0.0
    %285 = vmatpush1.msra.mxu0 %v260
    %286 = vmatprep.subr.mxu0 0.0
    %287 = vmatpush1.msra.mxu0 %v261
    %288 = vmatprep.subr.mxu0 0.0
    %289 = vmatpush1.msra.mxu0 %v262
    %290 = vmatprep.subr.mxu0 0.0
    %291 = vmatpush1.msra.mxu0 %v263
    %292 = vmatprep.subr.mxu0 0.0
    %293 = vmatpush1.msra.mxu0 %v264
    %294 = vmatprep.subr.mxu0 0.0
    %295 = vmatpush1.msra.mxu0 %v265
    %296 = vmatprep.subr.mxu0 0.0
    %297 = vmatpush1.msra.mxu0 %v266
    %298 = vmatprep.subr.mxu0 0.0
    %299 = vmatpush1.msra.mxu0 %v267
    %300 = vmatprep.subr.mxu0 0.0
    %301 = vmatpush1.msra.mxu0 %v268
    %302 = vmatprep.subr.mxu0 0.0
    %303 = vmatpush1.msra.mxu0 %v269
    %304 = vmatprep.subr.mxu0 0.0
    %305 = vmatpush1.msra.mxu0 %v270
    %306 = vmatprep.subr.mxu0 0.0
    %307 = vmatpush1.msra.mxu0 %v271
    %308 = vmatprep.subr.mxu0 0.0
    %309 = vmatpush1.msra.mxu0 %v272
    %310 = vmatprep.subr.mxu0 0.0
    %311 = vmatpush1.msra.mxu0 %v273
    %312 = vmatprep.subr.mxu0 0.0
    %313 = vmatpush1.msra.mxu0 %v274
    %314 = vmatprep.subr.mxu0 0.0
    %315 = vmatpush1.msra.mxu0 0.0
    %316 = vmatprep.subr.mxu0 0.0
    %317 = vmatpush1.msra.mxu0 0.0
    %318 = vmatprep.subr.mxu0 0.0
    %319 = vmatpush1.msra.mxu0 0.0
    %320 = vmatprep.subr.mxu0 0.0
    %321 = vmatpush1.msra.mxu0 0.0
    %322 = vmatprep.subr.mxu0 0.0
    %323 = vmatpush1.msra.mxu0 0.0
    %324 = vmatprep.subr.mxu0 0.0
    %325 = vmatpush1.msra.mxu0 0.0
    %326 = vmatprep.subr.mxu0 0.0
    %327 = vmatpush1.msra.mxu0 0.0
    %328 = vmatprep.subr.mxu0 0.0
    %329 = vmatpush1.msra.mxu0 0.0
    %330 = vmatprep.subr.mxu0 0.0
    %331 = vmatpush1.msra.mxu0 0.0
    %332 = vmatprep.subr.mxu0 0.0
    %333 = vmatpush1.msra.mxu0 0.0
    %334 = vmatprep.subr.mxu0 0.0
    %335 = vmatpush1.msra.mxu0 0.0
    %336 = vmatprep.subr.mxu0 0.0
    %337 = vmatpush1.msra.mxu0 0.0
    %338 = vmatprep.subr.mxu0 0.0
    %339 = vmatpush1.msra.mxu0 0.0
    %340 = vmatprep.subr.mxu0 0.0
    %341 = vmatpush1.msra.mxu0 0.0
    %342 = vmatprep.subr.mxu0 0.0
    %343 = vmatpush1.msra.mxu0 0.0
    %344 = vmatprep.subr.mxu0 0.0
    %345 = vmatpush1.msra.mxu0 0.0
    %346 = vmatprep.mubr.f32.mxu0 0.0
    %347 = vmatmul.mubr.f32.gmra.mrb[0].mxu0 %v258
    %v348 = vpop.f32.mrb[0].mxu0
    %v349 = vadd.f32 %v280, %v348
    %v350 = vpop.f32.mrb[0].mxu0
    %351 = vdwg.mxu0
    %v352 = vmax.f32 %v349, -20.0
    %v353 = vmin.f32 %v352, 2.0
    %v354 = vsub.f32 0.0, %v353
    %v355 = vmul.f32 %v354, 1.442695
    %v356 = vpow.pop %v355
    %v357 = vld [vmem:[%s7] sm:$0xff]
    %v358 = vlaneseq
    %v359 = vand.u32 %v358, 127
    %v360 = vcvt.s32.f32 %v359
    %v361 = vmul.f32 %v357, 4.0
    %363 = vset.pattern.permute.xlu0 4
    %364 = vperm.xlu0 %363, %v361
    %v365 = vpop.permute.xlu0 %364
    %vm367 = vcmp.ge.f32.partialorder %v360, %v365
    %v368 = vadd.f32 %v361, 4.0
    %370 = vset.pattern.permute.xlu0 4
    %371 = vperm.xlu0 %370, %v368
    %v372 = vpop.permute.xlu0 %371
    %vm374 = vcmp.lt.f32.partialorder %v360, %v372
    %vm375 = vmand %vm367, %vm374
    %v376 = vlaneseq
    %v377 = vshrl.u32 %v376, 7
    %v378 = vadd.s32 %v377, 8
    %vm379 = vcmp.eq.s32.totalorder %v377, %v359
    %vm380 = vcmp.eq.s32.totalorder %v378, %v359
    %v381 = vadd.s32 %v359, 4
    %vm382 = vcmp.eq.s32.totalorder %v377, %v381
    %vm383 = vcmp.eq.s32.totalorder %v378, %v381
    %vm384 = vmor %vm379, %vm382
    %vm385 = vmor %vm380, %vm383
    %v386 = vadd.s32 %v359, 8
    %vm387 = vcmp.eq.s32.totalorder %v377, %v386
    %vm388 = vcmp.eq.s32.totalorder %v378, %v386
    %vm389 = vmor %vm384, %vm387
    %vm390 = vmor %vm385, %vm388
    %v391 = vadd.s32 %v359, 12
    %vm392 = vcmp.eq.s32.totalorder %v377, %v391
    %vm393 = vcmp.eq.s32.totalorder %v378, %v391
    %vm394 = vmor %vm389, %vm392
    %vm395 = vmor %vm390, %vm393
    %v396 = vsel %vm394, 1, 0
    %v397 = vsel %vm395, 1, 0
    %v398 = vcvt.s32.f32 %v396
    %v399 = vcvt.s32.f32 %v397
    %vm400 = vcmp.eq.s32.totalorder %v359, %v377
    %v401 = vadd.s32 %v377, 4
    %vm402 = vcmp.eq.s32.totalorder %v359, %v401
    %vm403 = vmor %vm400, %vm402
    %vm404 = vcmp.eq.s32.totalorder %v359, %v378
    %vm405 = vmor %vm403, %vm404
    %v406 = vadd.s32 %v377, 12
    %vm407 = vcmp.eq.s32.totalorder %v359, %v406
    %vm408 = vmor %vm405, %vm407
    %v409 = vsel %vm408, 1, 0
    %v410 = vcvt.s32.f32 %v409
    %v411 = vmul.u32 %v359, 4
    %vm412 = vcmp.ge.s32.totalorder %v377, %v411
    %vm413 = vcmp.ge.s32.totalorder %v378, %v411
    %v414 = vadd.s32 %v359, 1
    %v415 = vmul.u32 %v414, 4
    %vm416 = vcmp.lt.s32.totalorder %v377, %v415
    %vm417 = vcmp.lt.s32.totalorder %v378, %v415
    %vm418 = vmand %vm412, %vm416
    %vm419 = vmand %vm413, %vm417
    %v420 = vsel %vm418, 1, 0
    %v421 = vsel %vm419, 1, 0
    %v422 = vcvt.s32.f32 %v420
    %v423 = vcvt.s32.f32 %v421
    %v424 = vsel %vm379, 1, 0
    %v425 = vcvt.s32.f32 %v424
    %vm426 = vcmp.eq.s32.totalorder %v359, 4
    %v427 = vsel %vm426, 1, 0
    %v428 = vcvt.s32.f32 %v427
    %v429 = vsel %vm375, %v349, 0.0
    %431 = vrot.lane.b32.xlu0 %v353, 112
    %v432 = vpop.permute.xlu0 %431
    %v434 = vsel %vm375, %v432, 0.0
    %v436 = vsel %vm101, %v434, 0
    %438 = vmatprep.subr.mxu0 0.0
    %439 = vmatpush1.msra.mxu0 %v398
    %440 = vmatprep.subr.mxu0 0.0
    %441 = vmatpush1.msra.mxu0 %v399
    %442 = vmatprep.subr.mxu0 0.0
    %443 = vmatpush1.msra.mxu0 0.0
    %444 = vmatprep.subr.mxu0 0.0
    %445 = vmatpush1.msra.mxu0 0.0
    %446 = vmatprep.subr.mxu0 0.0
    %447 = vmatpush1.msra.mxu0 0.0
    %448 = vmatprep.subr.mxu0 0.0
    %449 = vmatpush1.msra.mxu0 0.0
    %450 = vmatprep.subr.mxu0 0.0
    %451 = vmatpush1.msra.mxu0 0.0
    %452 = vmatprep.subr.mxu0 0.0
    %453 = vmatpush1.msra.mxu0 0.0
    %454 = vmatprep.subr.mxu0 0.0
    %455 = vmatpush1.msra.mxu0 0.0
    %456 = vmatprep.subr.mxu0 0.0
    %457 = vmatpush1.msra.mxu0 0.0
    %458 = vmatprep.subr.mxu0 0.0
    %459 = vmatpush1.msra.mxu0 0.0
    %460 = vmatprep.subr.mxu0 0.0
    %461 = vmatpush1.msra.mxu0 0.0
    %462 = vmatprep.subr.mxu0 0.0
    %463 = vmatpush1.msra.mxu0 0.0
    %464 = vmatprep.subr.mxu0 0.0
    %465 = vmatpush1.msra.mxu0 0.0
    %466 = vmatprep.subr.mxu0 0.0
    %467 = vmatpush1.msra.mxu0 0.0
    %468 = vmatprep.subr.mxu0 0.0
    %469 = vmatpush1.msra.mxu0 0.0
    %470 = vmatprep.subr.mxu0 0.0
    %471 = vmatpush1.msra.mxu0 0.0
    %472 = vmatprep.subr.mxu0 0.0
    %473 = vmatpush1.msra.mxu0 0.0
    %474 = vmatprep.subr.mxu0 0.0
    %475 = vmatpush1.msra.mxu0 0.0
    %476 = vmatprep.subr.mxu0 0.0
    %477 = vmatpush1.msra.mxu0 0.0
    %478 = vmatprep.subr.mxu0 0.0
    %479 = vmatpush1.msra.mxu0 0.0
    %480 = vmatprep.subr.mxu0 0.0
    %481 = vmatpush1.msra.mxu0 0.0
    %482 = vmatprep.subr.mxu0 0.0
    %483 = vmatpush1.msra.mxu0 0.0
    %484 = vmatprep.subr.mxu0 0.0
    %485 = vmatpush1.msra.mxu0 0.0
    %486 = vmatprep.subr.mxu0 0.0
    %487 = vmatpush1.msra.mxu0 0.0
    %488 = vmatprep.subr.mxu0 0.0
    %489 = vmatpush1.msra.mxu0 0.0
    %490 = vmatprep.subr.mxu0 0.0
    %491 = vmatpush1.msra.mxu0 0.0
    %492 = vmatprep.subr.mxu0 0.0
    %493 = vmatpush1.msra.mxu0 0.0
    %494 = vmatprep.subr.mxu0 0.0
    %495 = vmatpush1.msra.mxu0 0.0
    %496 = vmatprep.subr.mxu0 0.0
    %497 = vmatpush1.msra.mxu0 0.0
    %498 = vmatprep.subr.mxu0 0.0
    %499 = vmatpush1.msra.mxu0 0.0
    %500 = vmatprep.subr.mxu0 0.0
    %501 = vmatpush1.msra.mxu0 0.0
    %502 = vmatprep.mubr.f32.mxu0 0.0
    %503 = vmatmul.mubr.f32.gmra.mrb[0].mxu0 %v436
    %v504 = vpop.f32.mrb[0].mxu0
    %v505 = vadd.f32 0.0, %v504
    %v506 = vpop.f32.mrb[0].mxu0
    %507 = vdwg.mxu0
    %v508 = vmul.f32 %v505, 1.442695
    %v509 = vpow.pop %v508
    %v510 = vmul.f32 %v509, %v357
    %v512 = vsel %vm101, %v429, 0
    %514 = vmatprep.subr.mxu0 0.0
    %515 = vmatpush1.msra.mxu0 %v398
    %516 = vmatprep.subr.mxu0 0.0
    %517 = vmatpush1.msra.mxu0 %v399
    %518 = vmatprep.subr.mxu0 0.0
    %519 = vmatpush1.msra.mxu0 0.0
    %520 = vmatprep.subr.mxu0 0.0
    %521 = vmatpush1.msra.mxu0 0.0
    %522 = vmatprep.subr.mxu0 0.0
    %523 = vmatpush1.msra.mxu0 0.0
    %524 = vmatprep.subr.mxu0 0.0
    %525 = vmatpush1.msra.mxu0 0.0
    %526 = vmatprep.subr.mxu0 0.0
    %527 = vmatpush1.msra.mxu0 0.0
    %528 = vmatprep.subr.mxu0 0.0
    %529 = vmatpush1.msra.mxu0 0.0
    %530 = vmatprep.subr.mxu0 0.0
    %531 = vmatpush1.msra.mxu0 0.0
    %532 = vmatprep.subr.mxu0 0.0
    %533 = vmatpush1.msra.mxu0 0.0
    %534 = vmatprep.subr.mxu0 0.0
    %535 = vmatpush1.msra.mxu0 0.0
    %536 = vmatprep.subr.mxu0 0.0
    %537 = vmatpush1.msra.mxu0 0.0
    %538 = vmatprep.subr.mxu0 0.0
    %539 = vmatpush1.msra.mxu0 0.0
    %540 = vmatprep.subr.mxu0 0.0
    %541 = vmatpush1.msra.mxu0 0.0
    %542 = vmatprep.subr.mxu0 0.0
    %543 = vmatpush1.msra.mxu0 0.0
    %544 = vmatprep.subr.mxu0 0.0
    %545 = vmatpush1.msra.mxu0 0.0
    %546 = vmatprep.subr.mxu0 0.0
    %547 = vmatpush1.msra.mxu0 0.0
    %548 = vmatprep.subr.mxu0 0.0
    %549 = vmatpush1.msra.mxu0 0.0
    %550 = vmatprep.subr.mxu0 0.0
    %551 = vmatpush1.msra.mxu0 0.0
    %552 = vmatprep.subr.mxu0 0.0
    %553 = vmatpush1.msra.mxu0 0.0
    %554 = vmatprep.subr.mxu0 0.0
    %555 = vmatpush1.msra.mxu0 0.0
    %556 = vmatprep.subr.mxu0 0.0
    %557 = vmatpush1.msra.mxu0 0.0
    %558 = vmatprep.subr.mxu0 0.0
    %559 = vmatpush1.msra.mxu0 0.0
    %560 = vmatprep.subr.mxu0 0.0
    %561 = vmatpush1.msra.mxu0 0.0
    %562 = vmatprep.subr.mxu0 0.0
    %563 = vmatpush1.msra.mxu0 0.0
    %564 = vmatprep.subr.mxu0 0.0
    %565 = vmatpush1.msra.mxu0 0.0
    %566 = vmatprep.subr.mxu0 0.0
    %567 = vmatpush1.msra.mxu0 0.0
    %568 = vmatprep.subr.mxu0 0.0
    %569 = vmatpush1.msra.mxu0 0.0
    %570 = vmatprep.subr.mxu0 0.0
    %571 = vmatpush1.msra.mxu0 0.0
    %572 = vmatprep.subr.mxu0 0.0
    %573 = vmatpush1.msra.mxu0 0.0
    %574 = vmatprep.subr.mxu0 0.0
    %575 = vmatpush1.msra.mxu0 0.0
    %576 = vmatprep.subr.mxu0 0.0
    %577 = vmatpush1.msra.mxu0 0.0
    %578 = vmatprep.mubr.f32.mxu0 0.0
    %579 = vmatmul.mubr.f32.gmra.mrb[0].mxu0 %v512
    %v580 = vpop.f32.mrb[0].mxu0
    %v581 = vadd.f32 %v510, %v580
    %v582 = vpop.f32.mrb[0].mxu0
    %583 = vdwg.mxu0
    %v584 = vmul.f32 %v581, -2.0
    %v585 = vmax.f32 %v584, 0.0
    %v586 = vand.u32 2147483647, %v584
    %v587 = vsub.f32 0.0, %v586
    %v588 = vmul.f32 %v587, 1.442695
    %v589 = vpow.pop %v588
    %v590 = vadd.f32 %v589, 1.0
    %v591 = vlog2.pop %v590
    %v592 = vmul.f32 %v591, 0.6931472
    %v593 = vmul.f32 -0.5, %v589
    %v594 = vadd.f32 %v593, 1.0
    %v595 = vmul.f32 %v594, %v589
    %v596 = vand.u32 2147483647, %v589
    %vm597 = vcmp.lt.f32.partialorder %v596, 0.0004427343
    %v598 = vsel %vm597, %v595, %v592
    %v599 = vadd.f32 %v585, %v598
    %v600 = vsub.f32 0.6931472, %v581
    %v601 = vsub.f32 %v600, %v599
    %v602 = vmul.f32 %v601, 2.0
    %vm603 = vcmask 31744
    %v604 = vsel %vm603, %v602, 0.0
    %605 = vadd.xlane.f32.xlu0 %v604
    %v606 = vpop.xlane.xlu0 %605
    %v608 = vsel %vm603, %v581, 0
    %vm610 = vcmask 1043456
    %v612 = vsel %vm610, %v410, 0
    %614 = vmatprep.subr.mxu0 0.0
    %615 = vmatpush1.msra.mxu0 %v612
    %616 = vmatprep.subr.mxu0 0.0
    %617 = vmatpush1.msra.mxu0 0.0
    %618 = vmatprep.subr.mxu0 0.0
    %619 = vmatpush1.msra.mxu0 0.0
    %620 = vmatprep.subr.mxu0 0.0
    %621 = vmatpush1.msra.mxu0 0.0
    %622 = vmatprep.subr.mxu0 0.0
    %623 = vmatpush1.msra.mxu0 0.0
    %624 = vmatprep.subr.mxu0 0.0
    %625 = vmatpush1.msra.mxu0 0.0
    %626 = vmatprep.subr.mxu0 0.0
    %627 = vmatpush1.msra.mxu0 0.0
    %628 = vmatprep.subr.mxu0 0.0
    %629 = vmatpush1.msra.mxu0 0.0
    %630 = vmatprep.subr.mxu0 0.0
    %631 = vmatpush1.msra.mxu0 0.0
    %632 = vmatprep.subr.mxu0 0.0
    %633 = vmatpush1.msra.mxu0 0.0
    %634 = vmatprep.subr.mxu0 0.0
    %635 = vmatpush1.msra.mxu0 0.0
    %636 = vmatprep.subr.mxu0 0.0
    %637 = vmatpush1.msra.mxu0 0.0
    %638 = vmatprep.subr.mxu0 0.0
    %639 = vmatpush1.msra.mxu0 0.0
    %640 = vmatprep.subr.mxu0 0.0
    %641 = vmatpush1.msra.mxu0 0.0
    %642 = vmatprep.subr.mxu0 0.0
    %643 = vmatpush1.msra.mxu0 0.0
    %644 = vmatprep.subr.mxu0 0.0
    %645 = vmatpush1.msra.mxu0 0.0
    %646 = vmatprep.subr.mxu0 0.0
    %647 = vmatpush1.msra.mxu0 0.0
    %648 = vmatprep.subr.mxu0 0.0
    %649 = vmatpush1.msra.mxu0 0.0
    %650 = vmatprep.subr.mxu0 0.0
    %651 = vmatpush1.msra.mxu0 0.0
    %652 = vmatprep.subr.mxu0 0.0
    %653 = vmatpush1.msra.mxu0 0.0
    %654 = vmatprep.subr.mxu0 0.0
    %655 = vmatpush1.msra.mxu0 0.0
    %656 = vmatprep.subr.mxu0 0.0
    %657 = vmatpush1.msra.mxu0 0.0
    %658 = vmatprep.subr.mxu0 0.0
    %659 = vmatpush1.msra.mxu0 0.0
    %660 = vmatprep.subr.mxu0 0.0
    %661 = vmatpush1.msra.mxu0 0.0
    %662 = vmatprep.subr.mxu0 0.0
    %663 = vmatpush1.msra.mxu0 0.0
    %664 = vmatprep.subr.mxu0 0.0
    %665 = vmatpush1.msra.mxu0 0.0
    %666 = vmatprep.subr.mxu0 0.0
    %667 = vmatpush1.msra.mxu0 0.0
    %668 = vmatprep.subr.mxu0 0.0
    %669 = vmatpush1.msra.mxu0 0.0
    %670 = vmatprep.subr.mxu0 0.0
    %671 = vmatpush1.msra.mxu0 0.0
    %672 = vmatprep.subr.mxu0 0.0
    %673 = vmatpush1.msra.mxu0 0.0
    %674 = vmatprep.subr.mxu0 0.0
    %675 = vmatpush1.msra.mxu0 0.0
    %676 = vmatprep.subr.mxu0 0.0
    %677 = vmatpush1.msra.mxu0 0.0
    %678 = vmatprep.mubr.f32.mxu0 0.0
    %679 = vmatmul.mubr.f32.gmra.mrb[0].mxu0 %v608
    %v680 = vpop.f32.mrb[0].mxu0
    %v681 = vadd.f32 0.0, %v680
    %v682 = vpop.f32.mrb[0].mxu0
    %683 = vdwg.mxu0
    %v684 = vsub.f32 %v681, %v349
    %686 = vrot.lane.b32.xlu0 %v356, 112
    %v687 = vpop.permute.xlu0 %686
    %v689 = vmul.f32 %v684, %v687
    %v690 = vmul.f32 %v689, -0.5
    %v691 = vmul.f32 %v690, %v689
    %v692 = vsub.f32 %v691, %v432
    %v694 = vsel %vm101, %v692, 0
    %696 = vmatprep.subr.mxu0 0.0
    %697 = vmatpush1.msra.mxu0 %v422
    %698 = vmatprep.subr.mxu0 0.0
    %699 = vmatpush1.msra.mxu0 %v423
    %700 = vmatprep.subr.mxu0 0.0
    %701 = vmatpush1.msra.mxu0 0.0
    %702 = vmatprep.subr.mxu0 0.0
    %703 = vmatpush1.msra.mxu0 0.0
    %704 = vmatprep.subr.mxu0 0.0
    %705 = vmatpush1.msra.mxu0 0.0
    %706 = vmatprep.subr.mxu0 0.0
    %707 = vmatpush1.msra.mxu0 0.0
    %708 = vmatprep.subr.mxu0 0.0
    %709 = vmatpush1.msra.mxu0 0.0
    %710 = vmatprep.subr.mxu0 0.0
    %711 = vmatpush1.msra.mxu0 0.0
    %712 = vmatprep.subr.mxu0 0.0
    %713 = vmatpush1.msra.mxu0 0.0
    %714 = vmatprep.subr.mxu0 0.0
    %715 = vmatpush1.msra.mxu0 0.0
    %716 = vmatprep.subr.mxu0 0.0
    %717 = vmatpush1.msra.mxu0 0.0
    %718 = vmatprep.subr.mxu0 0.0
    %719 = vmatpush1.msra.mxu0 0.0
    %720 = vmatprep.subr.mxu0 0.0
    %721 = vmatpush1.msra.mxu0 0.0
    %722 = vmatprep.subr.mxu0 0.0
    %723 = vmatpush1.msra.mxu0 0.0
    %724 = vmatprep.subr.mxu0 0.0
    %725 = vmatpush1.msra.mxu0 0.0
    %726 = vmatprep.subr.mxu0 0.0
    %727 = vmatpush1.msra.mxu0 0.0
    %728 = vmatprep.subr.mxu0 0.0
    %729 = vmatpush1.msra.mxu0 0.0
    %730 = vmatprep.subr.mxu0 0.0
    %731 = vmatpush1.msra.mxu0 0.0
    %732 = vmatprep.subr.mxu0 0.0
    %733 = vmatpush1.msra.mxu0 0.0
    %734 = vmatprep.subr.mxu0 0.0
    %735 = vmatpush1.msra.mxu0 0.0
    %736 = vmatprep.subr.mxu0 0.0
    %737 = vmatpush1.msra.mxu0 0.0
    %738 = vmatprep.subr.mxu0 0.0
    %739 = vmatpush1.msra.mxu0 0.0
    %740 = vmatprep.subr.mxu0 0.0
    %741 = vmatpush1.msra.mxu0 0.0
    %742 = vmatprep.subr.mxu0 0.0
    %743 = vmatpush1.msra.mxu0 0.0
    %744 = vmatprep.subr.mxu0 0.0
    %745 = vmatpush1.msra.mxu0 0.0
    %746 = vmatprep.subr.mxu0 0.0
    %747 = vmatpush1.msra.mxu0 0.0
    %748 = vmatprep.subr.mxu0 0.0
    %749 = vmatpush1.msra.mxu0 0.0
    %750 = vmatprep.subr.mxu0 0.0
    %751 = vmatpush1.msra.mxu0 0.0
    %752 = vmatprep.subr.mxu0 0.0
    %753 = vmatpush1.msra.mxu0 0.0
    %754 = vmatprep.subr.mxu0 0.0
    %755 = vmatpush1.msra.mxu0 0.0
    %756 = vmatprep.subr.mxu0 0.0
    %757 = vmatpush1.msra.mxu0 0.0
    %758 = vmatprep.subr.mxu0 0.0
    %759 = vmatpush1.msra.mxu0 0.0
    %760 = vmatprep.mubr.f32.mxu0 0.0
    %761 = vmatmul.mubr.f32.gmra.mrb[0].mxu0 %v694
    %v762 = vpop.f32.mrb[0].mxu0
    %v763 = vadd.f32 0.0, %v762
    %v764 = vpop.f32.mrb[0].mxu0
    %765 = vdwg.mxu0
    %v766 = vsub.f32 %v763, 3.675754
    %v767 = vsel %vm603, %v766, -inf
    %768 = vmax.xlane.f32.xlu0 %v767
    %v769 = vpop.xlane.xlu0 %768
    %v770 = vsub.f32 %v766, %v769
    %v771 = vmul.f32 %v770, 1.442695
    %v772 = vpow.pop %v771
    %v773 = vsel %vm603, %v772, 0.0
    %774 = vadd.xlane.f32.xlu0 %v773
    %v775 = vpop.xlane.xlu0 %774
    %v776 = vlog2.pop %v775
    %v777 = vmul.f32 %v776, 0.6931472
    %v778 = vadd.f32 %v769, %v777
    %v779 = vsub.f32 %v778, %v606
    %v780 = vsub.f32 %v779, 1.3862944
    %v781 = vtanh.pop %v581
    %v782 = vmul.f32 %v780, %v428
    %v784 = vsel %vm603, %v781, 0
    %v787 = vsel %vm610, %v425, 0
    %789 = vmatprep.subr.mxu0 0.0
    %790 = vmatpush1.msra.mxu0 %v787
    %791 = vmatprep.subr.mxu0 0.0
    %792 = vmatpush1.msra.mxu0 0.0
    %793 = vmatprep.subr.mxu0 0.0
    %794 = vmatpush1.msra.mxu0 0.0
    %795 = vmatprep.subr.mxu0 0.0
    %796 = vmatpush1.msra.mxu0 0.0
    %797 = vmatprep.subr.mxu0 0.0
    %798 = vmatpush1.msra.mxu0 0.0
    %799 = vmatprep.subr.mxu0 0.0
    %800 = vmatpush1.msra.mxu0 0.0
    %801 = vmatprep.subr.mxu0 0.0
    %802 = vmatpush1.msra.mxu0 0.0
    %803 = vmatprep.subr.mxu0 0.0
    %804 = vmatpush1.msra.mxu0 0.0
    %805 = vmatprep.subr.mxu0 0.0
    %806 = vmatpush1.msra.mxu0 0.0
    %807 = vmatprep.subr.mxu0 0.0
    %808 = vmatpush1.msra.mxu0 0.0
    %809 = vmatprep.subr.mxu0 0.0
    %810 = vmatpush1.msra.mxu0 0.0
    %811 = vmatprep.subr.mxu0 0.0
    %812 = vmatpush1.msra.mxu0 0.0
    %813 = vmatprep.subr.mxu0 0.0
    %814 = vmatpush1.msra.mxu0 0.0
    %815 = vmatprep.subr.mxu0 0.0
    %816 = vmatpush1.msra.mxu0 0.0
    %817 = vmatprep.subr.mxu0 0.0
    %818 = vmatpush1.msra.mxu0 0.0
    %819 = vmatprep.subr.mxu0 0.0
    %820 = vmatpush1.msra.mxu0 0.0
    %821 = vmatprep.subr.mxu0 0.0
    %822 = vmatpush1.msra.mxu0 0.0
    %823 = vmatprep.subr.mxu0 0.0
    %824 = vmatpush1.msra.mxu0 0.0
    %825 = vmatprep.subr.mxu0 0.0
    %826 = vmatpush1.msra.mxu0 0.0
    %827 = vmatprep.subr.mxu0 0.0
    %828 = vmatpush1.msra.mxu0 0.0
    %829 = vmatprep.subr.mxu0 0.0
    %830 = vmatpush1.msra.mxu0 0.0
    %831 = vmatprep.subr.mxu0 0.0
    %832 = vmatpush1.msra.mxu0 0.0
    %833 = vmatprep.subr.mxu0 0.0
    %834 = vmatpush1.msra.mxu0 0.0
    %835 = vmatprep.subr.mxu0 0.0
    %836 = vmatpush1.msra.mxu0 0.0
    %837 = vmatprep.subr.mxu0 0.0
    %838 = vmatpush1.msra.mxu0 0.0
    %839 = vmatprep.subr.mxu0 0.0
    %840 = vmatpush1.msra.mxu0 0.0
    %841 = vmatprep.subr.mxu0 0.0
    %842 = vmatpush1.msra.mxu0 0.0
    %843 = vmatprep.subr.mxu0 0.0
    %844 = vmatpush1.msra.mxu0 0.0
    %845 = vmatprep.subr.mxu0 0.0
    %846 = vmatpush1.msra.mxu0 0.0
    %847 = vmatprep.subr.mxu0 0.0
    %848 = vmatpush1.msra.mxu0 0.0
    %849 = vmatprep.subr.mxu0 0.0
    %850 = vmatpush1.msra.mxu0 0.0
    %851 = vmatprep.subr.mxu0 0.0
    %852 = vmatpush1.msra.mxu0 0.0
    %853 = vmatprep.mubr.f32.mxu0 0.0
    %854 = vmatmul.mubr.f32.gmra.mrb[0].mxu0 %v784
    %v855 = vpop.f32.mrb[0].mxu0
    %v856 = vadd.f32 %v782, %v855
    %v857 = vpop.f32.mrb[0].mxu0
    %858 = vdwg.mxu0
    %vm859 = vcmask 64512
    %860 = vst.msk [vmem:[#allocation10] sm:$0xff] %vm859, %v856
    // Predicated region
    $region50: #{tpu_custom_call.1} parent=1 // pred_check
      _
    $region51: #{tpu_custom_call.1} parent=1 // pred_check_branch
      %862 = sbr.rel (0) target = $region53
    $region52: #{tpu_custom_call.1} parent=1 // pred_region
      %s864 = ssub.s32 128, 128
      %865 = vsyncadd [#allocation4], %s864
      %s867 = sshll.u32 [#allocation10], 4
      %s868 = int_to_ptr.vmem [resolvable:$true] %s867
      %870 = dma.vmem_to_hbm [thread:$0]  %s868, 128, %s8, [#allocation4]
    $region53: #{tpu_custom_call.1} parent=1 // pred_fallthru
      _
    // Predicated region
    $region54: #{tpu_custom_call.1} parent=1 // pred_check
      _
    $region55: #{tpu_custom_call.1} parent=1 // pred_check_branch
      %872 = sbr.rel (0) target = $region57
    $region56: #{tpu_custom_call.1} parent=1 // pred_region
      %873 = dma.done [#allocation4], 128
    $region57: #{tpu_custom_call.1} parent=1 // pred_fallthru
      _
    %874 = vsyncpa [#allocation3], 1
    %875 = vsyncpa [#allocation6], 1
    %876 = vsyncpa [#allocation9], 1
    %877 = vsyncpa [#allocation4], 1

// kernel: tpu_custom_call.1
$region0: #{tpu_custom_call.1}
  #allocation0 [shape = 'u32[]', space=smem, size = 0x4, offset = 0x4, fixed_abs, tag = 'smem constant byte address 0x4 - core index']
  #allocation1 [shape = 'u32[144,128]{1,0:T(1,128)}', space=vmem, size = 0x12000, scoped, tag = 'internal scratch']
  %s0 = inlined_call_operand.hbm [shape: f32[8,16], index: 0, kind: input, shape index: {}]
  %s1 = inlined_call_operand.hbm [shape: bf16[16,128], index: 1, kind: input, shape index: {}]
  %s2 = inlined_call_operand.vmem [shape: f32[1,128], index: 2, kind: input, shape index: {}]
  %s3 = inlined_call_operand.hbm [shape: bf16[128,128], index: 3, kind: input, shape index: {}]
  %s4 = inlined_call_operand.vmem [shape: f32[1,128], index: 4, kind: input, shape index: {}]
  %s5 = inlined_call_operand.hbm [shape: f32[128,128], index: 5, kind: input, shape index: {}]
  %s6 = inlined_call_operand.vmem [shape: f32[1,128], index: 6, kind: input, shape index: {}]
  %s7 = inlined_call_operand.vmem [shape: f32[8,8], index: 7, kind: input, shape index: {}]
  %s8 = inlined_call_operand.hbm [shape: f32[8,8], index: 8, kind: output, shape index: {}]
  %s9 = sld [smem:[#allocation0]]
  $region58: #{tpu_custom_call.1} parent=0
    _
  %s11 = ssub.s32 1, %s9
  %s12 = scalar_select 0, %s11, %s9
  $region1: #{tpu_custom_call.1} parent=0
    #allocation2 [shape = 'u8[4096]{0}', space=vmem, size = 0x1000, scoped, tag = 'input window, operand 0, single buffered']
    #allocation3 [shape = 's32[1]{0}', space=sflag, size = 0x4, scoped, tag = 'scoped memory for tpu_custom_call.1']
    #allocation4 [shape = 's32[1]{0}', space=sflag, size = 0x4, scoped, tag = 'scoped memory for tpu_custom_call.1']
    #allocation5 [shape = 'u8[4096]{0}', space=vmem, size = 0x1000, scoped, tag = 'input window, operand 1, single buffered']
    #allocation6 [shape = 's32[1]{0}', space=sflag, size = 0x4, scoped, tag = 'scoped memory for tpu_custom_call.1']
    #allocation7 [shape = 'u8[32768]{0}', space=vmem, size = 0x8000, scoped, tag = 'input window, operand 3, single buffered']
    #allocation8 [shape = 'u8[65536]{0}', space=vmem, size = 0x10000, scoped, tag = 'input window, operand 5, single buffered']
    #allocation9 [shape = 's32[1]{0}', space=sflag, size = 0x4, scoped, tag = 'scoped memory for tpu_custom_call.1']
    #allocation10 [shape = 'u8[4096]{0}', space=vmem, size = 0x1000, scoped, tag = 'output window, operand 0, single buffered']
    %13 = vsyncpa [#allocation3], 0
    %14 = vsyncpa [#allocation6], 0
    %15 = vsyncpa [#allocation9], 0
    %16 = vsyncpa [#allocation4], 0
    // Predicated region
    $region2: #{tpu_custom_call.1} parent=1 // pred_check
      _
    $region3: #{tpu_custom_call.1} parent=1 // pred_check_branch
      %18 = sbr.rel (0) target = $region5
    $region4: #{tpu_custom_call.1} parent=1 // pred_region
      %s20 = ssub.s32 128, 128
      %21 = vsyncadd [#allocation3], %s20
      %s23 = sshll.u32 [#allocation2], 4
      %s24 = int_to_ptr.vmem [resolvable:$true] %s23
      %26 = dma.hbm_to_vmem [thread:$0]  %s0, 128, %s24, [#allocation3]
    $region5: #{tpu_custom_call.1} parent=1 // pred_fallthru
      _
    // Predicated region
    $region6: #{tpu_custom_call.1} parent=1 // pred_check
      _
    $region7: #{tpu_custom_call.1} parent=1 // pred_check_branch
      %28 = sbr.rel (0) target = $region9
    $region8: #{tpu_custom_call.1} parent=1 // pred_region
      %s30 = ssub.s32 128, 128
      %31 = vsyncadd [#allocation6], %s30
      %s32 = sshll.u32 [#allocation5], 4
      %s33 = int_to_ptr.vmem [resolvable:$true] %s32
      %38 = dma.hbm_to_vmem [thread:$0]  %s1, 128, %s33, [#allocation6], 64, 64, 4
    $region9: #{tpu_custom_call.1} parent=1 // pred_fallthru
      _
    // Predicated region
    $region10: #{tpu_custom_call.1} parent=1 // pred_check
      _
    $region11: #{tpu_custom_call.1} parent=1 // pred_check_branch
      %40 = sbr.rel (0) target = $region13
    $region12: #{tpu_custom_call.1} parent=1 // pred_region
      _
    $region13: #{tpu_custom_call.1} parent=1 // pred_fallthru
      _
    // Predicated region
    $region14: #{tpu_custom_call.1} parent=1 // pred_check
      _
    $region15: #{tpu_custom_call.1} parent=1 // pred_check_branch
      %42 = sbr.rel (0) target = $region17
    $region16: #{tpu_custom_call.1} parent=1 // pred_region
      %s44 = ssub.s32 1024, 1024
      %45 = vsyncadd [#allocation6], %s44
      %s46 = sshll.u32 [#allocation7], 4
      %s47 = int_to_ptr.vmem [resolvable:$true] %s46
      %52 = dma.hbm_to_vmem [thread:$0]  %s3, 1024, %s47, [#allocation6], 64, 64, 4
    $region17: #{tpu_custom_call.1} parent=1 // pred_fallthru
      _
    // Predicated region
    $region18: #{tpu_custom_call.1} parent=1 // pred_check
      _
    $region19: #{tpu_custom_call.1} parent=1 // pred_check_branch
      %54 = sbr.rel (0) target = $region21
    $region20: #{tpu_custom_call.1} parent=1 // pred_region
      _
    $region21: #{tpu_custom_call.1} parent=1 // pred_fallthru
      _
    // Predicated region
    $region22: #{tpu_custom_call.1} parent=1 // pred_check
      _
    $region23: #{tpu_custom_call.1} parent=1 // pred_check_branch
      %56 = sbr.rel (0) target = $region25
    $region24: #{tpu_custom_call.1} parent=1 // pred_region
      %s58 = ssub.s32 2048, 2048
      %59 = vsyncadd [#allocation9], %s58
      %s60 = sshll.u32 [#allocation8], 4
      %s61 = int_to_ptr.vmem [resolvable:$true] %s60
      %66 = dma.hbm_to_vmem [thread:$0]  %s5, 2048, %s61, [#allocation9], 128, 128, 8
    $region25: #{tpu_custom_call.1} parent=1 // pred_fallthru
      _
    // Predicated region
    $region26: #{tpu_custom_call.1} parent=1 // pred_check
      _
    $region27: #{tpu_custom_call.1} parent=1 // pred_check_branch
      %68 = sbr.rel (0) target = $region29
    $region28: #{tpu_custom_call.1} parent=1 // pred_region
      _
    $region29: #{tpu_custom_call.1} parent=1 // pred_fallthru
      _
    // Predicated region
    $region30: #{tpu_custom_call.1} parent=1 // pred_check
      _
    $region31: #{tpu_custom_call.1} parent=1 // pred_check_branch
      %70 = sbr.rel (0) target = $region33
    $region32: #{tpu_custom_call.1} parent=1 // pred_region
      _
    $region33: #{tpu_custom_call.1} parent=1 // pred_fallthru
      _
    // Predicated region
    $region34: #{tpu_custom_call.1} parent=1 // pred_check
      _
    $region35: #{tpu_custom_call.1} parent=1 // pred_check_branch
      %72 = sbr.rel (0) target = $region37
    $region36: #{tpu_custom_call.1} parent=1 // pred_region
      %73 = dma.done [#allocation3], 128
    $region37: #{tpu_custom_call.1} parent=1 // pred_fallthru
      _
    // Predicated region
    $region38: #{tpu_custom_call.1} parent=1 // pred_check
      _
    $region39: #{tpu_custom_call.1} parent=1 // pred_check_branch
      %75 = sbr.rel (0) target = $region41
    $region40: #{tpu_custom_call.1} parent=1 // pred_region
      %76 = dma.done [#allocation6], 128
    $region41: #{tpu_custom_call.1} parent=1 // pred_fallthru
      _
    // Predicated region
    $region42: #{tpu_custom_call.1} parent=1 // pred_check
      _
    $region43: #{tpu_custom_call.1} parent=1 // pred_check_branch
      %78 = sbr.rel (0) target = $region45
    $region44: #{tpu_custom_call.1} parent=1 // pred_region
      %79 = dma.done [#allocation6], 1024
    $region45: #{tpu_custom_call.1} parent=1 // pred_fallthru
      _
    // Predicated region
    $region46: #{tpu_custom_call.1} parent=1 // pred_check
      _
    $region47: #{tpu_custom_call.1} parent=1 // pred_check_branch
      %81 = sbr.rel (0) target = $region49
    $region48: #{tpu_custom_call.1} parent=1 // pred_region
      %82 = dma.done [#allocation9], 2048
    $region49: #{tpu_custom_call.1} parent=1 // pred_fallthru
      _
    %v84 = vld [vmem:[#allocation2] sm:$0xff]
    %v85 = vpack.c.bf16 %v84, %v84
    %v86 = vld [vmem:[#allocation5] sm:$0xf]
    %v87 = vld [vmem:[#allocation5 + $0x4] sm:$0xf]
    %v88 = vld [vmem:[%s2] sm:$0x1]
    %v90 = vlaneseq
    %v91 = vshrl.u32 %v90, 7
    %v92 = vsub.s32 0, %v91
    %v93 = vrot.slane %v88, %v92
    %v97 = vunpack.c.l.b16 %v86
    %v98 = vunpack.c.l.b16 %v87
    %v99 = vpack.c.b16 %v98, %v97
    %vm101 = vcmask 130048
    %v103 = vsel %vm101, %v85, 0
    %105 = vmatprep.subr.bf16.mxu0 0
    %106 = vmatpush1.bf16.msra.mxu0 %v99
    %107 = vmatprep.subr.bf16.mxu0 0
    %108 = vmatpush1.bf16.msra.mxu0 0
    %109 = vmatprep.subr.bf16.mxu0 0
    %110 = vmatpush1.bf16.msra.mxu0 0
    %111 = vmatprep.subr.bf16.mxu0 0
    %112 = vmatpush1.bf16.msra.mxu0 0
    %113 = vmatprep.subr.bf16.mxu0 0
    %114 = vmatpush1.bf16.msra.mxu0 0
    %115 = vmatprep.subr.bf16.mxu0 0
    %116 = vmatpush1.bf16.msra.mxu0 0
    %117 = vmatprep.subr.bf16.mxu0 0
    %118 = vmatpush1.bf16.msra.mxu0 0
    %119 = vmatprep.subr.bf16.mxu0 0
    %120 = vmatpush1.bf16.msra.mxu0 0
    %121 = vmatprep.subr.bf16.mxu0 0
    %122 = vmatpush1.bf16.msra.mxu0 0
    %123 = vmatprep.subr.bf16.mxu0 0
    %124 = vmatpush1.bf16.msra.mxu0 0
    %125 = vmatprep.subr.bf16.mxu0 0
    %126 = vmatpush1.bf16.msra.mxu0 0
    %127 = vmatprep.subr.bf16.mxu0 0
    %128 = vmatpush1.bf16.msra.mxu0 0
    %129 = vmatprep.subr.bf16.mxu0 0
    %130 = vmatpush1.bf16.msra.mxu0 0
    %131 = vmatprep.subr.bf16.mxu0 0
    %132 = vmatpush1.bf16.msra.mxu0 0
    %133 = vmatprep.subr.bf16.mxu0 0
    %134 = vmatpush1.bf16.msra.mxu0 0
    %135 = vmatprep.subr.bf16.mxu0 0
    %136 = vmatpush1.bf16.msra.mxu0 0
    %137 = vmatprep.mubr.bf16.mxu0 0
    %138 = vmatmul.mubr.bf16.gmra.mrb[0].mxu0 %v103
    %v139 = vpop.f32.mrb[0].mxu0
    %v140 = vadd.f32 %v93, %v139
    %v141 = vpop.f32.mrb[0].mxu0
    %v142 = vpop.f32.mrb[0].mxu0
    %v143 = vpop.f32.mrb[0].mxu0
    %144 = vdwg.mxu0
    %v145 = vmax.f32 %v140, 0.0
    %v146 = vpack.c.bf16 %v145, %v145
    %v147 = vld [vmem:[#allocation7] sm:$0xf]
    %v148 = vld [vmem:[#allocation7 + $0x4] sm:$0xf]
    %v149 = vld [vmem:[#allocation7 + $0x8] sm:$0xf]
    %v150 = vld [vmem:[#allocation7 + $0xc] sm:$0xf]
    %v151 = vld [vmem:[#allocation7 + $0x10] sm:$0xf]
    %v152 = vld [vmem:[#allocation7 + $0x14] sm:$0xf]
    %v153 = vld [vmem:[#allocation7 + $0x18] sm:$0xf]
    %v154 = vld [vmem:[#allocation7 + $0x1c] sm:$0xf]
    %v155 = vld [vmem:[#allocation7 + $0x20] sm:$0xf]
    %v156 = vld [vmem:[#allocation7 + $0x24] sm:$0xf]
    %v157 = vld [vmem:[#allocation7 + $0x28] sm:$0xf]
    %v158 = vld [vmem:[#allocation7 + $0x2c] sm:$0xf]
    %v159 = vld [vmem:[#allocation7 + $0x30] sm:$0xf]
    %v160 = vld [vmem:[#allocation7 + $0x34] sm:$0xf]
    %v161 = vld [vmem:[#allocation7 + $0x38] sm:$0xf]
    %v162 = vld [vmem:[#allocation7 + $0x3c] sm:$0xf]
    %v163 = vld [vmem:[%s4] sm:$0x1]
    %v165 = vlaneseq
    %v166 = vshrl.u32 %v165, 7
    %v167 = vsub.s32 0, %v166
    %v168 = vrot.slane %v163, %v167
    %v186 = vunpack.c.l.b16 %v147
    %v187 = vunpack.c.l.b16 %v148
    %v188 = vunpack.c.l.b16 %v149
    %v189 = vunpack.c.l.b16 %v150
    %v190 = vunpack.c.l.b16 %v151
    %v191 = vunpack.c.l.b16 %v152
    %v192 = vunpack.c.l.b16 %v153
    %v193 = vunpack.c.l.b16 %v154
    %v194 = vunpack.c.l.b16 %v155
    %v195 = vunpack.c.l.b16 %v156
    %v196 = vunpack.c.l.b16 %v157
    %v197 = vunpack.c.l.b16 %v158
    %v198 = vunpack.c.l.b16 %v159
    %v199 = vunpack.c.l.b16 %v160
    %v200 = vunpack.c.l.b16 %v161
    %v201 = vunpack.c.l.b16 %v162
    %v202 = vpack.c.b16 %v187, %v186
    %v203 = vpack.c.b16 %v189, %v188
    %v204 = vpack.c.b16 %v191, %v190
    %v205 = vpack.c.b16 %v193, %v192
    %v206 = vpack.c.b16 %v195, %v194
    %v207 = vpack.c.b16 %v197, %v196
    %v208 = vpack.c.b16 %v199, %v198
    %v209 = vpack.c.b16 %v201, %v200
    %218 = vmatprep.subr.bf16.mxu0 0
    %219 = vmatpush1.bf16.msra.mxu0 %v202
    %220 = vmatprep.subr.bf16.mxu0 0
    %221 = vmatpush1.bf16.msra.mxu0 %v203
    %222 = vmatprep.subr.bf16.mxu0 0
    %223 = vmatpush1.bf16.msra.mxu0 %v204
    %224 = vmatprep.subr.bf16.mxu0 0
    %225 = vmatpush1.bf16.msra.mxu0 %v205
    %226 = vmatprep.subr.bf16.mxu0 0
    %227 = vmatpush1.bf16.msra.mxu0 %v206
    %228 = vmatprep.subr.bf16.mxu0 0
    %229 = vmatpush1.bf16.msra.mxu0 %v207
    %230 = vmatprep.subr.bf16.mxu0 0
    %231 = vmatpush1.bf16.msra.mxu0 %v208
    %232 = vmatprep.subr.bf16.mxu0 0
    %233 = vmatpush1.bf16.msra.mxu0 %v209
    %234 = vmatprep.subr.bf16.mxu0 0
    %235 = vmatpush1.bf16.msra.mxu0 0
    %236 = vmatprep.subr.bf16.mxu0 0
    %237 = vmatpush1.bf16.msra.mxu0 0
    %238 = vmatprep.subr.bf16.mxu0 0
    %239 = vmatpush1.bf16.msra.mxu0 0
    %240 = vmatprep.subr.bf16.mxu0 0
    %241 = vmatpush1.bf16.msra.mxu0 0
    %242 = vmatprep.subr.bf16.mxu0 0
    %243 = vmatpush1.bf16.msra.mxu0 0
    %244 = vmatprep.subr.bf16.mxu0 0
    %245 = vmatpush1.bf16.msra.mxu0 0
    %246 = vmatprep.subr.bf16.mxu0 0
    %247 = vmatpush1.bf16.msra.mxu0 0
    %248 = vmatprep.subr.bf16.mxu0 0
    %249 = vmatpush1.bf16.msra.mxu0 0
    %250 = vmatprep.mubr.bf16.mxu0 0
    %251 = vmatmul.mubr.bf16.gmra.mrb[0].mxu0 %v146
    %v252 = vpop.f32.mrb[0].mxu0
    %v253 = vadd.f32 %v168, %v252
    %v254 = vpop.f32.mrb[0].mxu0
    %v255 = vpop.f32.mrb[0].mxu0
    %v256 = vpop.f32.mrb[0].mxu0
    %257 = vdwg.mxu0
    %v258 = vmax.f32 %v253, 0.0
    %v259 = vld [vmem:[#allocation8] sm:$0xff]
    %v260 = vld [vmem:[#allocation8 + $0x8] sm:$0xff]
    %v261 = vld [vmem:[#allocation8 + $0x10] sm:$0xff]
    %v262 = vld [vmem:[#allocation8 + $0x18] sm:$0xff]
    %v263 = vld [vmem:[#allocation8 + $0x20] sm:$0xff]
    %v264 = vld [vmem:[#allocation8 + $0x28] sm:$0xff]
    %v265 = vld [vmem:[#allocation8 + $0x30] sm:$0xff]
    %v266 = vld [vmem:[#allocation8 + $0x38] sm:$0xff]
    %v267 = vld [vmem:[#allocation8 + $0x40] sm:$0xff]
    %v268 = vld [vmem:[#allocation8 + $0x48] sm:$0xff]
    %v269 = vld [vmem:[#allocation8 + $0x50] sm:$0xff]
    %v270 = vld [vmem:[#allocation8 + $0x58] sm:$0xff]
    %v271 = vld [vmem:[#allocation8 + $0x60] sm:$0xff]
    %v272 = vld [vmem:[#allocation8 + $0x68] sm:$0xff]
    %v273 = vld [vmem:[#allocation8 + $0x70] sm:$0xff]
    %v274 = vld [vmem:[#allocation8 + $0x78] sm:$0xff]
    %v275 = vld [vmem:[%s6] sm:$0x1]
    %v277 = vlaneseq
    %v278 = vshrl.u32 %v277, 7
    %v279 = vsub.s32 0, %v278
    %v280 = vrot.slane %v275, %v279
    %282 = vmatprep.subr.mxu0 0.0
    %283 = vmatpush1.msra.mxu0 %v259
    %284 = vmatprep.subr.mxu0 0.0
    %285 = vmatpush1.msra.mxu0 %v260
    %286 = vmatprep.subr.mxu0 0.0
    %287 = vmatpush1.msra.mxu0 %v261
    %288 = vmatprep.subr.mxu0 0.0
    %289 = vmatpush1.msra.mxu0 %v262
    %290 = vmatprep.subr.mxu0 0.0
    %291 = vmatpush1.msra.mxu0 %v263
    %292 = vmatprep.subr.mxu0 0.0
    %293 = vmatpush1.msra.mxu0 %v264
    %294 = vmatprep.subr.mxu0 0.0
    %295 = vmatpush1.msra.mxu0 %v265
    %296 = vmatprep.subr.mxu0 0.0
    %297 = vmatpush1.msra.mxu0 %v266
    %298 = vmatprep.subr.mxu0 0.0
    %299 = vmatpush1.msra.mxu0 %v267
    %300 = vmatprep.subr.mxu0 0.0
    %301 = vmatpush1.msra.mxu0 %v268
    %302 = vmatprep.subr.mxu0 0.0
    %303 = vmatpush1.msra.mxu0 %v269
    %304 = vmatprep.subr.mxu0 0.0
    %305 = vmatpush1.msra.mxu0 %v270
    %306 = vmatprep.subr.mxu0 0.0
    %307 = vmatpush1.msra.mxu0 %v271
    %308 = vmatprep.subr.mxu0 0.0
    %309 = vmatpush1.msra.mxu0 %v272
    %310 = vmatprep.subr.mxu0 0.0
    %311 = vmatpush1.msra.mxu0 %v273
    %312 = vmatprep.subr.mxu0 0.0
    %313 = vmatpush1.msra.mxu0 %v274
    %314 = vmatprep.subr.mxu0 0.0
    %315 = vmatpush1.msra.mxu0 0.0
    %316 = vmatprep.subr.mxu0 0.0
    %317 = vmatpush1.msra.mxu0 0.0
    %318 = vmatprep.subr.mxu0 0.0
    %319 = vmatpush1.msra.mxu0 0.0
    %320 = vmatprep.subr.mxu0 0.0
    %321 = vmatpush1.msra.mxu0 0.0
    %322 = vmatprep.subr.mxu0 0.0
    %323 = vmatpush1.msra.mxu0 0.0
    %324 = vmatprep.subr.mxu0 0.0
    %325 = vmatpush1.msra.mxu0 0.0
    %326 = vmatprep.subr.mxu0 0.0
    %327 = vmatpush1.msra.mxu0 0.0
    %328 = vmatprep.subr.mxu0 0.0
    %329 = vmatpush1.msra.mxu0 0.0
    %330 = vmatprep.subr.mxu0 0.0
    %331 = vmatpush1.msra.mxu0 0.0
    %332 = vmatprep.subr.mxu0 0.0
    %333 = vmatpush1.msra.mxu0 0.0
    %334 = vmatprep.subr.mxu0 0.0
    %335 = vmatpush1.msra.mxu0 0.0
    %336 = vmatprep.subr.mxu0 0.0
    %337 = vmatpush1.msra.mxu0 0.0
    %338 = vmatprep.subr.mxu0 0.0
    %339 = vmatpush1.msra.mxu0 0.0
    %340 = vmatprep.subr.mxu0 0.0
    %341 = vmatpush1.msra.mxu0 0.0
    %342 = vmatprep.subr.mxu0 0.0
    %343 = vmatpush1.msra.mxu0 0.0
    %344 = vmatprep.subr.mxu0 0.0
    %345 = vmatpush1.msra.mxu0 0.0
    %346 = vmatprep.mubr.f32.mxu0 0.0
    %347 = vmatmul.mubr.f32.gmra.mrb[0].mxu0 %v258
    %v348 = vpop.f32.mrb[0].mxu0
    %v349 = vadd.f32 %v280, %v348
    %v350 = vpop.f32.mrb[0].mxu0
    %351 = vdwg.mxu0
    %v352 = vmax.f32 %v349, -20.0
    %v353 = vmin.f32 %v352, 2.0
    %v354 = vsub.f32 0.0, %v353
    %v355 = vmul.f32 %v354, 1.442695
    %v356 = vpow.pop %v355
    %v357 = vld [vmem:[%s7] sm:$0xff]
    %v358 = vlaneseq
    %v359 = vand.u32 %v358, 127
    %v360 = vcvt.s32.f32 %v359
    %v361 = vmul.f32 %v357, 4.0
    %363 = vset.pattern.permute.xlu0 4
    %364 = vperm.xlu0 %363, %v361
    %v365 = vpop.permute.xlu0 %364
    %vm367 = vcmp.ge.f32.partialorder %v360, %v365
    %v368 = vadd.f32 %v361, 4.0
    %370 = vset.pattern.permute.xlu0 4
    %371 = vperm.xlu0 %370, %v368
    %v372 = vpop.permute.xlu0 %371
    %vm374 = vcmp.lt.f32.partialorder %v360, %v372
    %vm375 = vmand %vm367, %vm374
    %v376 = vlaneseq
    %v377 = vshrl.u32 %v376, 7
    %v378 = vadd.s32 %v377, 8
    %vm379 = vcmp.eq.s32.totalorder %v377, %v359
    %vm380 = vcmp.eq.s32.totalorder %v378, %v359
    %v381 = vadd.s32 %v359, 4
    %vm382 = vcmp.eq.s32.totalorder %v377, %v381
    %vm383 = vcmp.eq.s32.totalorder %v378, %v381
    %vm384 = vmor %vm379, %vm382
    %vm385 = vmor %vm380, %vm383
    %v386 = vadd.s32 %v359, 8
    %vm387 = vcmp.eq.s32.totalorder %v377, %v386
    %vm388 = vcmp.eq.s32.totalorder %v378, %v386
    %vm389 = vmor %vm384, %vm387
    %vm390 = vmor %vm385, %vm388
    %v391 = vadd.s32 %v359, 12
    %vm392 = vcmp.eq.s32.totalorder %v377, %v391
    %vm393 = vcmp.eq.s32.totalorder %v378, %v391
    %vm394 = vmor %vm389, %vm392
    %vm395 = vmor %vm390, %vm393
    %v396 = vsel %vm394, 1, 0
    %v397 = vsel %vm395, 1, 0
    %v398 = vcvt.s32.f32 %v396
    %v399 = vcvt.s32.f32 %v397
    %vm400 = vcmp.eq.s32.totalorder %v359, %v377
    %v401 = vadd.s32 %v377, 4
    %vm402 = vcmp.eq.s32.totalorder %v359, %v401
    %vm403 = vmor %vm400, %vm402
    %vm404 = vcmp.eq.s32.totalorder %v359, %v378
    %vm405 = vmor %vm403, %vm404
    %v406 = vadd.s32 %v377, 12
    %vm407 = vcmp.eq.s32.totalorder %v359, %v406
    %vm408 = vmor %vm405, %vm407
    %v409 = vsel %vm408, 1, 0
    %v410 = vcvt.s32.f32 %v409
    %v411 = vmul.u32 %v359, 4
    %vm412 = vcmp.ge.s32.totalorder %v377, %v411
    %vm413 = vcmp.ge.s32.totalorder %v378, %v411
    %v414 = vadd.s32 %v359, 1
    %v415 = vmul.u32 %v414, 4
    %vm416 = vcmp.lt.s32.totalorder %v377, %v415
    %vm417 = vcmp.lt.s32.totalorder %v378, %v415
    %vm418 = vmand %vm412, %vm416
    %vm419 = vmand %vm413, %vm417
    %v420 = vsel %vm418, 1, 0
    %v421 = vsel %vm419, 1, 0
    %v422 = vcvt.s32.f32 %v420
    %v423 = vcvt.s32.f32 %v421
    %v424 = vsel %vm379, 1, 0
    %v425 = vcvt.s32.f32 %v424
    %vm426 = vcmp.eq.s32.totalorder %v359, 4
    %v427 = vsel %vm426, 1, 0
    %v428 = vcvt.s32.f32 %v427
    %v429 = vsel %vm375, %v349, 0.0
    %431 = vrot.lane.b32.xlu0 %v353, 112
    %v432 = vpop.permute.xlu0 %431
    %v434 = vsel %vm375, %v432, 0.0
    %v436 = vsel %vm101, %v434, 0
    %438 = vmatprep.subr.mxu0 0.0
    %439 = vmatpush1.msra.mxu0 %v398
    %440 = vmatprep.subr.mxu0 0.0
    %441 = vmatpush1.msra.mxu0 %v399
    %442 = vmatprep.subr.mxu0 0.0
    %443 = vmatpush1.msra.mxu0 0.0
    %444 = vmatprep.subr.mxu0 0.0
    %445 = vmatpush1.msra.mxu0 0.0
    %446 = vmatprep.subr.mxu0 0.0
    %447 = vmatpush1.msra.mxu0 0.0
    %448 = vmatprep.subr.mxu0 0.0
    %449 = vmatpush1.msra.mxu0 0.0
    %450 = vmatprep.subr.mxu0 0.0
    %451 = vmatpush1.msra.mxu0 0.0
    %452 = vmatprep.subr.mxu0 0.0
    %453 = vmatpush1.msra.mxu0 0.0
    %454 = vmatprep.subr.mxu0 0.0
    %455 = vmatpush1.msra.mxu0 0.0
    %456 = vmatprep.subr.mxu0 0.0
    %457 = vmatpush1.msra.mxu0 0.0
    %458 = vmatprep.subr.mxu0 0.0
    %459 = vmatpush1.msra.mxu0 0.0
    %460 = vmatprep.subr.mxu0 0.0
    %461 = vmatpush1.msra.mxu0 0.0
    %462 = vmatprep.subr.mxu0 0.0
    %463 = vmatpush1.msra.mxu0 0.0
    %464 = vmatprep.subr.mxu0 0.0
    %465 = vmatpush1.msra.mxu0 0.0
    %466 = vmatprep.subr.mxu0 0.0
    %467 = vmatpush1.msra.mxu0 0.0
    %468 = vmatprep.subr.mxu0 0.0
    %469 = vmatpush1.msra.mxu0 0.0
    %470 = vmatprep.subr.mxu0 0.0
    %471 = vmatpush1.msra.mxu0 0.0
    %472 = vmatprep.subr.mxu0 0.0
    %473 = vmatpush1.msra.mxu0 0.0
    %474 = vmatprep.subr.mxu0 0.0
    %475 = vmatpush1.msra.mxu0 0.0
    %476 = vmatprep.subr.mxu0 0.0
    %477 = vmatpush1.msra.mxu0 0.0
    %478 = vmatprep.subr.mxu0 0.0
    %479 = vmatpush1.msra.mxu0 0.0
    %480 = vmatprep.subr.mxu0 0.0
    %481 = vmatpush1.msra.mxu0 0.0
    %482 = vmatprep.subr.mxu0 0.0
    %483 = vmatpush1.msra.mxu0 0.0
    %484 = vmatprep.subr.mxu0 0.0
    %485 = vmatpush1.msra.mxu0 0.0
    %486 = vmatprep.subr.mxu0 0.0
    %487 = vmatpush1.msra.mxu0 0.0
    %488 = vmatprep.subr.mxu0 0.0
    %489 = vmatpush1.msra.mxu0 0.0
    %490 = vmatprep.subr.mxu0 0.0
    %491 = vmatpush1.msra.mxu0 0.0
    %492 = vmatprep.subr.mxu0 0.0
    %493 = vmatpush1.msra.mxu0 0.0
    %494 = vmatprep.subr.mxu0 0.0
    %495 = vmatpush1.msra.mxu0 0.0
    %496 = vmatprep.subr.mxu0 0.0
    %497 = vmatpush1.msra.mxu0 0.0
    %498 = vmatprep.subr.mxu0 0.0
    %499 = vmatpush1.msra.mxu0 0.0
    %500 = vmatprep.subr.mxu0 0.0
    %501 = vmatpush1.msra.mxu0 0.0
    %502 = vmatprep.mubr.f32.mxu0 0.0
    %503 = vmatmul.mubr.f32.gmra.mrb[0].mxu0 %v436
    %v504 = vpop.f32.mrb[0].mxu0
    %v505 = vadd.f32 0.0, %v504
    %v506 = vpop.f32.mrb[0].mxu0
    %507 = vdwg.mxu0
    %v508 = vmul.f32 %v505, 1.442695
    %v509 = vpow.pop %v508
    %v510 = vmul.f32 %v509, %v357
    %v512 = vsel %vm101, %v429, 0
    %514 = vmatprep.subr.mxu0 0.0
    %515 = vmatpush1.msra.mxu0 %v398
    %516 = vmatprep.subr.mxu0 0.0
    %517 = vmatpush1.msra.mxu0 %v399
    %518 = vmatprep.subr.mxu0 0.0
    %519 = vmatpush1.msra.mxu0 0.0
    %520 = vmatprep.subr.mxu0 0.0
    %521 = vmatpush1.msra.mxu0 0.0
    %522 = vmatprep.subr.mxu0 0.0
    %523 = vmatpush1.msra.mxu0 0.0
    %524 = vmatprep.subr.mxu0 0.0
    %525 = vmatpush1.msra.mxu0 0.0
    %526 = vmatprep.subr.mxu0 0.0
    %527 = vmatpush1.msra.mxu0 0.0
    %528 = vmatprep.subr.mxu0 0.0
    %529 = vmatpush1.msra.mxu0 0.0
    %530 = vmatprep.subr.mxu0 0.0
    %531 = vmatpush1.msra.mxu0 0.0
    %532 = vmatprep.subr.mxu0 0.0
    %533 = vmatpush1.msra.mxu0 0.0
    %534 = vmatprep.subr.mxu0 0.0
    %535 = vmatpush1.msra.mxu0 0.0
    %536 = vmatprep.subr.mxu0 0.0
    %537 = vmatpush1.msra.mxu0 0.0
    %538 = vmatprep.subr.mxu0 0.0
    %539 = vmatpush1.msra.mxu0 0.0
    %540 = vmatprep.subr.mxu0 0.0
    %541 = vmatpush1.msra.mxu0 0.0
    %542 = vmatprep.subr.mxu0 0.0
    %543 = vmatpush1.msra.mxu0 0.0
    %544 = vmatprep.subr.mxu0 0.0
    %545 = vmatpush1.msra.mxu0 0.0
    %546 = vmatprep.subr.mxu0 0.0
    %547 = vmatpush1.msra.mxu0 0.0
    %548 = vmatprep.subr.mxu0 0.0
    %549 = vmatpush1.msra.mxu0 0.0
    %550 = vmatprep.subr.mxu0 0.0
    %551 = vmatpush1.msra.mxu0 0.0
    %552 = vmatprep.subr.mxu0 0.0
    %553 = vmatpush1.msra.mxu0 0.0
    %554 = vmatprep.subr.mxu0 0.0
    %555 = vmatpush1.msra.mxu0 0.0
    %556 = vmatprep.subr.mxu0 0.0
    %557 = vmatpush1.msra.mxu0 0.0
    %558 = vmatprep.subr.mxu0 0.0
    %559 = vmatpush1.msra.mxu0 0.0
    %560 = vmatprep.subr.mxu0 0.0
    %561 = vmatpush1.msra.mxu0 0.0
    %562 = vmatprep.subr.mxu0 0.0
    %563 = vmatpush1.msra.mxu0 0.0
    %564 = vmatprep.subr.mxu0 0.0
    %565 = vmatpush1.msra.mxu0 0.0
    %566 = vmatprep.subr.mxu0 0.0
    %567 = vmatpush1.msra.mxu0 0.0
    %568 = vmatprep.subr.mxu0 0.0
    %569 = vmatpush1.msra.mxu0 0.0
    %570 = vmatprep.subr.mxu0 0.0
    %571 = vmatpush1.msra.mxu0 0.0
    %572 = vmatprep.subr.mxu0 0.0
    %573 = vmatpush1.msra.mxu0 0.0
    %574 = vmatprep.subr.mxu0 0.0
    %575 = vmatpush1.msra.mxu0 0.0
    %576 = vmatprep.subr.mxu0 0.0
    %577 = vmatpush1.msra.mxu0 0.0
    %578 = vmatprep.mubr.f32.mxu0 0.0
    %579 = vmatmul.mubr.f32.gmra.mrb[0].mxu0 %v512
    %v580 = vpop.f32.mrb[0].mxu0
    %v581 = vadd.f32 %v510, %v580
    %v582 = vpop.f32.mrb[0].mxu0
    %583 = vdwg.mxu0
    %v584 = vmul.f32 %v581, -2.0
    %v585 = vmax.f32 %v584, 0.0
    %v586 = vand.u32 2147483647, %v584
    %v587 = vsub.f32 0.0, %v586
    %v588 = vmul.f32 %v587, 1.442695
    %v589 = vpow.pop %v588
    %v590 = vadd.f32 %v589, 1.0
    %v591 = vlog2.pop %v590
    %v592 = vmul.f32 %v591, 0.6931472
    %v593 = vmul.f32 -0.5, %v589
    %v594 = vadd.f32 %v593, 1.0
    %v595 = vmul.f32 %v594, %v589
    %v596 = vand.u32 2147483647, %v589
    %vm597 = vcmp.lt.f32.partialorder %v596, 0.0004427343
    %v598 = vsel %vm597, %v595, %v592
    %v599 = vadd.f32 %v585, %v598
    %v600 = vsub.f32 0.6931472, %v581
    %v601 = vsub.f32 %v600, %v599
    %v602 = vmul.f32 %v601, 2.0
    %vm603 = vcmask 31744
    %v604 = vsel %vm603, %v602, 0.0
    %605 = vadd.xlane.f32.xlu0 %v604
    %v606 = vpop.xlane.xlu0 %605
    %v608 = vsel %vm603, %v581, 0
    %vm610 = vcmask 1043456
    %v612 = vsel %vm610, %v410, 0
    %614 = vmatprep.subr.mxu0 0.0
    %615 = vmatpush1.msra.mxu0 %v612
    %616 = vmatprep.subr.mxu0 0.0
    %617 = vmatpush1.msra.mxu0 0.0
    %618 = vmatprep.subr.mxu0 0.0
    %619 = vmatpush1.msra.mxu0 0.0
    %620 = vmatprep.subr.mxu0 0.0
    %621 = vmatpush1.msra.mxu0 0.0
    %622 = vmatprep.subr.mxu0 0.0
    %623 = vmatpush1.msra.mxu0 0.0
    %624 = vmatprep.subr.mxu0 0.0
    %625 = vmatpush1.msra.mxu0 0.0
    %626 = vmatprep.subr.mxu0 0.0
    %627 = vmatpush1.msra.mxu0 0.0
    %628 = vmatprep.subr.mxu0 0.0
    %629 = vmatpush1.msra.mxu0 0.0
    %630 = vmatprep.subr.mxu0 0.0
    %631 = vmatpush1.msra.mxu0 0.0
    %632 = vmatprep.subr.mxu0 0.0
    %633 = vmatpush1.msra.mxu0 0.0
    %634 = vmatprep.subr.mxu0 0.0
    %635 = vmatpush1.msra.mxu0 0.0
    %636 = vmatprep.subr.mxu0 0.0
    %637 = vmatpush1.msra.mxu0 0.0
    %638 = vmatprep.subr.mxu0 0.0
    %639 = vmatpush1.msra.mxu0 0.0
    %640 = vmatprep.subr.mxu0 0.0
    %641 = vmatpush1.msra.mxu0 0.0
    %642 = vmatprep.subr.mxu0 0.0
    %643 = vmatpush1.msra.mxu0 0.0
    %644 = vmatprep.subr.mxu0 0.0
    %645 = vmatpush1.msra.mxu0 0.0
    %646 = vmatprep.subr.mxu0 0.0
    %647 = vmatpush1.msra.mxu0 0.0
    %648 = vmatprep.subr.mxu0 0.0
    %649 = vmatpush1.msra.mxu0 0.0
    %650 = vmatprep.subr.mxu0 0.0
    %651 = vmatpush1.msra.mxu0 0.0
    %652 = vmatprep.subr.mxu0 0.0
    %653 = vmatpush1.msra.mxu0 0.0
    %654 = vmatprep.subr.mxu0 0.0
    %655 = vmatpush1.msra.mxu0 0.0
    %656 = vmatprep.subr.mxu0 0.0
    %657 = vmatpush1.msra.mxu0 0.0
    %658 = vmatprep.subr.mxu0 0.0
    %659 = vmatpush1.msra.mxu0 0.0
    %660 = vmatprep.subr.mxu0 0.0
    %661 = vmatpush1.msra.mxu0 0.0
    %662 = vmatprep.subr.mxu0 0.0
    %663 = vmatpush1.msra.mxu0 0.0
    %664 = vmatprep.subr.mxu0 0.0
    %665 = vmatpush1.msra.mxu0 0.0
    %666 = vmatprep.subr.mxu0 0.0
    %667 = vmatpush1.msra.mxu0 0.0
    %668 = vmatprep.subr.mxu0 0.0
    %669 = vmatpush1.msra.mxu0 0.0
    %670 = vmatprep.subr.mxu0 0.0
    %671 = vmatpush1.msra.mxu0 0.0
    %672 = vmatprep.subr.mxu0 0.0
    %673 = vmatpush1.msra.mxu0 0.0
    %674 = vmatprep.subr.mxu0 0.0
    %675 = vmatpush1.msra.mxu0 0.0
    %676 = vmatprep.subr.mxu0 0.0
    %677 = vmatpush1.msra.mxu0 0.0
    %678 = vmatprep.mubr.f32.mxu0 0.0
    %679 = vmatmul.mubr.f32.gmra.mrb[0].mxu0 %v608
    %v680 = vpop.f32.mrb[0].mxu0
    %v681 = vadd.f32 0.0, %v680
    %v682 = vpop.f32.mrb[0].mxu0
    %683 = vdwg.mxu0
    %v684 = vsub.f32 %v681, %v349
    %686 = vrot.lane.b32.xlu0 %v356, 112
    %v687 = vpop.permute.xlu0 %686
    %v689 = vmul.f32 %v684, %v687
    %v690 = vmul.f32 %v689, -0.5
    %v691 = vmul.f32 %v690, %v689
    %v692 = vsub.f32 %v691, %v432
    %v694 = vsel %vm101, %v692, 0
    %696 = vmatprep.subr.mxu0 0.0
    %697 = vmatpush1.msra.mxu0 %v422
    %698 = vmatprep.subr.mxu0 0.0
    %699 = vmatpush1.msra.mxu0 %v423
    %700 = vmatprep.subr.mxu0 0.0
    %701 = vmatpush1.msra.mxu0 0.0
    %702 = vmatprep.subr.mxu0 0.0
    %703 = vmatpush1.msra.mxu0 0.0
    %704 = vmatprep.subr.mxu0 0.0
    %705 = vmatpush1.msra.mxu0 0.0
    %706 = vmatprep.subr.mxu0 0.0
    %707 = vmatpush1.msra.mxu0 0.0
    %708 = vmatprep.subr.mxu0 0.0
    %709 = vmatpush1.msra.mxu0 0.0
    %710 = vmatprep.subr.mxu0 0.0
    %711 = vmatpush1.msra.mxu0 0.0
    %712 = vmatprep.subr.mxu0 0.0
    %713 = vmatpush1.msra.mxu0 0.0
    %714 = vmatprep.subr.mxu0 0.0
    %715 = vmatpush1.msra.mxu0 0.0
    %716 = vmatprep.subr.mxu0 0.0
    %717 = vmatpush1.msra.mxu0 0.0
    %718 = vmatprep.subr.mxu0 0.0
    %719 = vmatpush1.msra.mxu0 0.0
    %720 = vmatprep.subr.mxu0 0.0
    %721 = vmatpush1.msra.mxu0 0.0
    %722 = vmatprep.subr.mxu0 0.0
    %723 = vmatpush1.msra.mxu0 0.0
    %724 = vmatprep.subr.mxu0 0.0
    %725 = vmatpush1.msra.mxu0 0.0
    %726 = vmatprep.subr.mxu0 0.0
    %727 = vmatpush1.msra.mxu0 0.0
    %728 = vmatprep.subr.mxu0 0.0
    %729 = vmatpush1.msra.mxu0 0.0
    %730 = vmatprep.subr.mxu0 0.0
    %731 = vmatpush1.msra.mxu0 0.0
    %732 = vmatprep.subr.mxu0 0.0
    %733 = vmatpush1.msra.mxu0 0.0
    %734 = vmatprep.subr.mxu0 0.0
    %735 = vmatpush1.msra.mxu0 0.0
    %736 = vmatprep.subr.mxu0 0.0
    %737 = vmatpush1.msra.mxu0 0.0
    %738 = vmatprep.subr.mxu0 0.0
    %739 = vmatpush1.msra.mxu0 0.0
    %740 = vmatprep.subr.mxu0 0.0
    %741 = vmatpush1.msra.mxu0 0.0
    %742 = vmatprep.subr.mxu0 0.0
    %743 = vmatpush1.msra.mxu0 0.0
    %744 = vmatprep.subr.mxu0 0.0
    %745 = vmatpush1.msra.mxu0 0.0
    %746 = vmatprep.subr.mxu0 0.0
    %747 = vmatpush1.msra.mxu0 0.0
    %748 = vmatprep.subr.mxu0 0.0
    %749 = vmatpush1.msra.mxu0 0.0
    %750 = vmatprep.subr.mxu0 0.0
    %751 = vmatpush1.msra.mxu0 0.0
    %752 = vmatprep.subr.mxu0 0.0
    %753 = vmatpush1.msra.mxu0 0.0
    %754 = vmatprep.subr.mxu0 0.0
    %755 = vmatpush1.msra.mxu0 0.0
    %756 = vmatprep.subr.mxu0 0.0
    %757 = vmatpush1.msra.mxu0 0.0
    %758 = vmatprep.subr.mxu0 0.0
    %759 = vmatpush1.msra.mxu0 0.0
    %760 = vmatprep.mubr.f32.mxu0 0.0
    %761 = vmatmul.mubr.f32.gmra.mrb[0].mxu0 %v694
    %v762 = vpop.f32.mrb[0].mxu0
    %v763 = vadd.f32 0.0, %v762
    %v764 = vpop.f32.mrb[0].mxu0
    %765 = vdwg.mxu0
    %v766 = vsub.f32 %v763, 3.675754
    %v767 = vsel %vm603, %v766, -inf
    %768 = vmax.xlane.f32.xlu0 %v767
    %v769 = vpop.xlane.xlu0 %768
    %v770 = vsub.f32 %v766, %v769
    %v771 = vmul.f32 %v770, 1.442695
    %v772 = vpow.pop %v771
    %v773 = vsel %vm603, %v772, 0.0
    %774 = vadd.xlane.f32.xlu0 %v773
    %v775 = vpop.xlane.xlu0 %774
    %v776 = vlog2.pop %v775
    %v777 = vmul.f32 %v776, 0.6931472
    %v778 = vadd.f32 %v769, %v777
    %v779 = vsub.f32 %v778, %v606
    %v780 = vsub.f32 %v779, 1.3862944
    %v781 = vtanh.pop %v581
    %v782 = vmul.f32 %v780, %v428
    %v784 = vsel %vm603, %v781, 0
    %v787 = vsel %vm610, %v425, 0
    %789 = vmatprep.subr.mxu0 0.0
    %790 = vmatpush1.msra.mxu0 %v787
    %791 = vmatprep.subr.mxu0 0.0
    %792 = vmatpush1.msra.mxu0 0.0
    %793 = vmatprep.subr.mxu0 0.0
    %794 = vmatpush1.msra.mxu0 0.0
    %795 = vmatprep.subr.mxu0 0.0
    %796 = vmatpush1.msra.mxu0 0.0
    %797 = vmatprep.subr.mxu0 0.0
    %798 = vmatpush1.msra.mxu0 0.0
    %799 = vmatprep.subr.mxu0 0.0
    %800 = vmatpush1.msra.mxu0 0.0
    %801 = vmatprep.subr.mxu0 0.0
    %802 = vmatpush1.msra.mxu0 0.0
    %803 = vmatprep.subr.mxu0 0.0
    %804 = vmatpush1.msra.mxu0 0.0
    %805 = vmatprep.subr.mxu0 0.0
    %806 = vmatpush1.msra.mxu0 0.0
    %807 = vmatprep.subr.mxu0 0.0
    %808 = vmatpush1.msra.mxu0 0.0
    %809 = vmatprep.subr.mxu0 0.0
    %810 = vmatpush1.msra.mxu0 0.0
    %811 = vmatprep.subr.mxu0 0.0
    %812 = vmatpush1.msra.mxu0 0.0
    %813 = vmatprep.subr.mxu0 0.0
    %814 = vmatpush1.msra.mxu0 0.0
    %815 = vmatprep.subr.mxu0 0.0
    %816 = vmatpush1.msra.mxu0 0.0
    %817 = vmatprep.subr.mxu0 0.0
    %818 = vmatpush1.msra.mxu0 0.0
    %819 = vmatprep.subr.mxu0 0.0
    %820 = vmatpush1.msra.mxu0 0.0
    %821 = vmatprep.subr.mxu0 0.0
    %822 = vmatpush1.msra.mxu0 0.0
    %823 = vmatprep.subr.mxu0 0.0
    %824 = vmatpush1.msra.mxu0 0.0
    %825 = vmatprep.subr.mxu0 0.0
    %826 = vmatpush1.msra.mxu0 0.0
    %827 = vmatprep.subr.mxu0 0.0
    %828 = vmatpush1.msra.mxu0 0.0
    %829 = vmatprep.subr.mxu0 0.0
    %830 = vmatpush1.msra.mxu0 0.0
    %831 = vmatprep.subr.mxu0 0.0
    %832 = vmatpush1.msra.mxu0 0.0
    %833 = vmatprep.subr.mxu0 0.0
    %834 = vmatpush1.msra.mxu0 0.0
    %835 = vmatprep.subr.mxu0 0.0
    %836 = vmatpush1.msra.mxu0 0.0
    %837 = vmatprep.subr.mxu0 0.0
    %838 = vmatpush1.msra.mxu0 0.0
    %839 = vmatprep.subr.mxu0 0.0
    %840 = vmatpush1.msra.mxu0 0.0
    %841 = vmatprep.subr.mxu0 0.0
    %842 = vmatpush1.msra.mxu0 0.0
    %843 = vmatprep.subr.mxu0 0.0
    %844 = vmatpush1.msra.mxu0 0.0
    %845 = vmatprep.subr.mxu0 0.0
    %846 = vmatpush1.msra.mxu0 0.0
    %847 = vmatprep.subr.mxu0 0.0
    %848 = vmatpush1.msra.mxu0 0.0
    %849 = vmatprep.subr.mxu0 0.0
    %850 = vmatpush1.msra.mxu0 0.0
    %851 = vmatprep.subr.mxu0 0.0
    %852 = vmatpush1.msra.mxu0 0.0
    %853 = vmatprep.mubr.f32.mxu0 0.0
    %854 = vmatmul.mubr.f32.gmra.mrb[0].mxu0 %v784
    %v855 = vpop.f32.mrb[0].mxu0
    %v856 = vadd.f32 %v782, %v855
    %v857 = vpop.f32.mrb[0].mxu0
    %858 = vdwg.mxu0
    %vm859 = vcmask 64512
    %860 = vst.msk [vmem:[#allocation10] sm:$0xff] %vm859, %v856
    // Predicated region
    $region50: #{tpu_custom_call.1} parent=1 // pred_check
      _
    $region51: #{tpu_custom_call.1} parent=1 // pred_check_branch
      %862 = sbr.rel (0) target = $region53
    $region52: #{tpu_custom_call.1} parent=1 // pred_region
      %s864 = ssub.s32 128, 128
      %865 = vsyncadd [#allocation4], %s864
      %s867 = sshll.u32 [#allocation10], 4
      %s868 = int_to_ptr.vmem [resolvable:$true] %s867
      %870 = dma.vmem_to_hbm [thread:$0]  %s868, 128, %s8, [#allocation4]
    $region53: #{tpu_custom_call.1} parent=1 // pred_fallthru
      _
    // Predicated region
    $region54: #{tpu_custom_call.1} parent=1 // pred_check
      _
    $region55: #{tpu_custom_call.1} parent=1 // pred_check_branch
      %872 = sbr.rel (0) target = $region57
    $region56: #{tpu_custom_call.1} parent=1 // pred_region
      %873 = dma.done [#allocation4], 128
    $region57: #{tpu_custom_call.1} parent=1 // pred_fallthru
      _
    %874 = vsyncpa [#allocation3], 1
    %875 = vsyncpa [#allocation6], 1
    %876 = vsyncpa [#allocation9], 1
    %877 = vsyncpa [#allocation4], 1

</llo_original>
